<compile_context>
chip_gen: v6e
topology: v6e:2x2x1
jax: 0.10.0
libtpu: 0.0.40
codegen_flags: <defaults>
</compile_context>

<pallas_src>
import functools

import jax
import jax.numpy as jnp
from jax.experimental import pallas as pl
from jax.experimental.pallas import tpu as pltpu  # noqa: F401  (TPU backend)


# ----------------------------- Pallas kernels -----------------------------

def _conv_pool_kernel(p_ref, w_ref, b_ref, o_ref, *, m1):
    # p_ref: (4*m1, K) im2col patches, position-major over the 2x2 pool window.
    # One MXU matmul covers all four pool positions; maxpool is three maxes over
    # row-aligned slices; folded-BN bias + ReLU applied after the pool (valid since
    # the bias is shared and ReLU is monotone). Channels stay on the lane axis.
    z = jnp.dot(p_ref[...], w_ref[...], preferred_element_type=jnp.float32)
    z = jnp.maximum(jnp.maximum(z[0 * m1:1 * m1, :], z[1 * m1:2 * m1, :]),
                    jnp.maximum(z[2 * m1:3 * m1, :], z[3 * m1:4 * m1, :]))
    o_ref[...] = jnp.maximum(z + b_ref[...], 0.0)


def _head_kernel(feat_ref, wa_ref, ba_ref, wb_ref, bb_ref,
                 wc1_ref, wc2_ref, bc_ref, digits_ref, pair_ref, *, half):
    # linear_1 (Linear->ReLU->Linear->Softmax) on the batched 2B branch features,
    # then linear_2 (Linear->Sigmoid) on the concatenated digit pair — all fused,
    # intermediates stay in VMEM/vregs.
    h = jnp.dot(feat_ref[...], wa_ref[...], preferred_element_type=jnp.float32) + ba_ref[...]
    h = jnp.maximum(h, 0.0)
    logits = jnp.dot(h, wb_ref[...], preferred_element_type=jnp.float32) + bb_ref[...]
    m = jnp.max(logits, axis=-1, keepdims=True)
    e = jnp.exp(logits - m)
    d = e * pl.reciprocal(jnp.sum(e, axis=-1, keepdims=True), approx=True)
    digits_ref[...] = d
    # cat([d1, d2], dim=1) @ W2  ==  d1 @ W2[:10] + d2 @ W2[10:]
    d1 = d[:half, :]
    d2 = d[half:, :]
    z = (jnp.dot(d1, wc1_ref[...], preferred_element_type=jnp.float32)
         + jnp.dot(d2, wc2_ref[...], preferred_element_type=jnp.float32)
         + bc_ref[...])
    pair_ref[...] = pl.reciprocal(1.0 + jnp.exp(-z), approx=True)


# ----------------------------- kernel wrappers -----------------------------

def _fullspec(shape):
    return pl.BlockSpec(shape, lambda i: (0,) * len(shape))


def conv_bn_relu_pool(patches, w, b):
    M4, K = patches.shape
    m1 = M4 // 4
    N = w.shape[1]
    return pl.pallas_call(
        functools.partial(_conv_pool_kernel, m1=m1),
        out_shape=jax.ShapeDtypeStruct((m1, N), jnp.float32),
        grid=(1,),
        in_specs=[_fullspec((M4, K)), _fullspec((K, N)), _fullspec((1, N))],
        out_specs=_fullspec((m1, N)),
    )(patches, w, b.reshape(1, N))


def head(feat, wa, ba, wb, bb, wc1, wc2, bc):
    M, K = feat.shape            # M = 2*B  (branch-major: rows [0,B) branch 1, [B,2B) branch 2)
    half = M // 2
    Na, Nb, Nc = wa.shape[1], wb.shape[1], wc1.shape[1]
    digits, pair = pl.pallas_call(
        functools.partial(_head_kernel, half=half),
        out_shape=(jax.ShapeDtypeStruct((M, Nb), jnp.float32),
                   jax.ShapeDtypeStruct((half, Nc), jnp.float32)),
        grid=(1,),
        in_specs=[_fullspec((M, K)), _fullspec((K, Na)), _fullspec((1, Na)),
                  _fullspec((Na, Nb)), _fullspec((1, Nb)),
                  _fullspec((Nb, Nc)), _fullspec((Nb, Nc)), _fullspec((1, Nc))],
        out_specs=[_fullspec((M, Nb)), _fullspec((half, Nc))],
    )(feat, wa, ba.reshape(1, Na), wb, bb.reshape(1, Nb), wc1, wc2, bc.reshape(1, Nc))
    return digits, pair


# ----------------------------- glue (JAX / trace-time constants) -----------------------------

def im2col_pooled(x_nhwc, k, pad):
    # im2col patches for conv(kernel=k, padding=pad) + 2x2 maxpool, stacked
    # position-major over the pool window: rows ordered (pool_pos, b, ho, wo).
    x = jnp.pad(x_nhwc, ((0, 0), (pad, pad), (pad, pad), (0, 0)))
    B, H, W, C = x.shape
    oh, ow = H - k + 1, W - k + 1
    cols = [x[:, i:i + oh, j:j + ow, :] for i in range(k) for j in range(k)]
    p = jnp.stack(cols, axis=3).reshape(B, oh, ow, k * k * C)   # feature idx = (kh*k+kw)*C + c
    hp, wp = oh // 2, ow // 2
    p = p.reshape(B, hp, 2, wp, 2, k * k * C)
    p = jnp.transpose(p, (2, 4, 0, 1, 3, 5))                    # (ph, pw, B, hp, wp, K)
    return p.reshape(4 * B * hp * wp, k * k * C), hp, wp


def fold_params(p, eps=1e-5):
    # All of this is constant-folded at compile time (params are jit closure consts).
    f = {}
    # conv1 + BatchNorm2d(32): fold scale into weight, bias into a single shift.
    s1 = p["bn1_gamma"] / jnp.sqrt(p["bn1_var"] + eps)
    w1 = jnp.transpose(p["w_conv1"], (2, 3, 1, 0)).reshape(25, 32)
    f["w1"] = w1 * s1[None, :]
    f["b1"] = p["b_conv1"] * s1 + p["bn1_beta"] - p["bn1_mean"] * s1
    # conv2 + BatchNorm2d(64)
    s2 = p["bn2_gamma"] / jnp.sqrt(p["bn2_var"] + eps)
    w2 = jnp.transpose(p["w_conv2"], (2, 3, 1, 0)).reshape(800, 64)
    f["w2"] = w2 * s2[None, :]
    f["b2"] = p["b_conv2"] * s2 + p["bn2_beta"] - p["bn2_mean"] * s2
    # linear_1 first layer: permute input columns so it consumes NHWC-flattened
    # (2,2,64) features directly (PyTorch .view flattens NCHW / channel-major).
    col = jnp.array([c * 4 + h * 2 + w
                     for h in range(2) for w in range(2) for c in range(64)],
                    dtype=jnp.int32)
    f["wa"] = p["w_l1a"][:, col].T            # (256, 64)
    f["ba"] = p["b_l1a"]
    f["wb"] = p["w_l1b"].T                    # (64, 10)
    f["bb"] = p["b_l1b"]
    wc = p["w_l2"].T                          # (20, 2), pre-split for the fused head
    f["wc1"] = wc[:10, :]
    f["wc2"] = wc[10:, :]
    f["bc"] = p["b_l2"]
    return f


def init_params():
    keys = jax.random.split(jax.random.PRNGKey(42), 10)

    def unif(key, shape, fan_in):
        bound = 1.0 / (fan_in ** 0.5)
        return jax.random.uniform(key, shape, jnp.float32, -bound, bound)

    p = {}
    # conv block 1: Conv2d(1, 32, k=5, padding=1) + BatchNorm2d(32)
    p["w_conv1"] = unif(keys[0], (32, 1, 5, 5), 1 * 5 * 5)
    p["b_conv1"] = unif(keys[1], (32,), 1 * 5 * 5)
    p["bn1_gamma"] = jnp.ones((32,), jnp.float32)
    p["bn1_beta"] = jnp.zeros((32,), jnp.float32)
    p["bn1_mean"] = jnp.zeros((32,), jnp.float32)
    p["bn1_var"] = jnp.ones((32,), jnp.float32)
    # conv block 2: Conv2d(32, 64, k=5, padding=1) + BatchNorm2d(64)
    p["w_conv2"] = unif(keys[2], (64, 32, 5, 5), 32 * 5 * 5)
    p["b_conv2"] = unif(keys[3], (64,), 32 * 5 * 5)
    p["bn2_gamma"] = jnp.ones((64,), jnp.float32)
    p["bn2_beta"] = jnp.zeros((64,), jnp.float32)
    p["bn2_mean"] = jnp.zeros((64,), jnp.float32)
    p["bn2_var"] = jnp.ones((64,), jnp.float32)
    # linear_1: Linear(256, 64) -> ReLU -> Linear(64, 10) -> Softmax
    p["w_l1a"] = unif(keys[4], (64, 256), 256)
    p["b_l1a"] = unif(keys[5], (64,), 256)
    p["w_l1b"] = unif(keys[6], (10, 64), 64)
    p["b_l1b"] = unif(keys[7], (10,), 64)
    # linear_2: Linear(20, 2) -> Sigmoid
    p["w_l2"] = unif(keys[8], (2, 20), 20)
    p["b_l2"] = unif(keys[9], (2,), 20)
    return p


def auxiliary_model_forward(x, p):
    # x: (B, 2, 14, 14) NCHW digit pairs.
    B = x.shape[0]
    f = fold_params(p)

    # Batch both siamese branches: branch-major rows -> (2B, 14, 14, 1) NHWC.
    x2 = jnp.transpose(x, (1, 0, 2, 3)).reshape(2 * B, 14, 14, 1)

    # conv1 + BN1 + ReLU + 2x2 maxpool (one fused Pallas kernel).  Dropout2d: identity (eval).
    patches1, hp1, wp1 = im2col_pooled(x2, 5, 1)            # (4*2B*36, 25)
    y1 = conv_bn_relu_pool(patches1, f["w1"], f["b1"])      # (2B*36, 32), rows (b, h, w)
    y1 = y1.reshape(2 * B, hp1, wp1, 32)                    # (2B, 6, 6, 32) NHWC

    # conv2 + BN2 + ReLU + 2x2 maxpool.  Dropout2d: identity (eval).
    patches2, hp2, wp2 = im2col_pooled(y1, 5, 1)            # (4*2B*4, 800)
    y2 = conv_bn_relu_pool(patches2, f["w2"], f["b2"])      # (2B*4, 64)

    # NHWC flatten; the NCHW .view(B,-1) ordering is absorbed into f["wa"].
    feat = y2.reshape(2 * B, hp2 * wp2 * 64)                # (2B, 256)

    # Fused head: linear_1 (+softmax) on all 2B rows, linear_2 (+sigmoid) on the pair.
    # Dropout(p=0.3): identity in eval mode.
    digits, output = head(feat, f["wa"], f["ba"], f["wb"], f["bb"],
                          f["wc1"], f["wc2"], f["bc"])
    out_digits_1 = digits[:B]                               # (B, 10)
    out_digits_2 = digits[B:]                               # (B, 10)
    return out_digits_1, out_digits_2, output               # output: (B, 2)


# TODO(synk): Dropout/Dropout2d are stochastic in train mode; eval-mode identity is used here.


if __name__ == "__main__":
    params = init_params()
    x = jax.random.normal(jax.random.PRNGKey(0), (2, 2, 14, 14), jnp.float32)

    fwd = jax.jit(lambda xx: auxiliary_model_forward(xx, params))
    d1, d2, out = fwd(x)
    jax.block_until_ready((d1, d2, out))

    assert d1.shape == (2, 10) and d2.shape == (2, 10) and out.shape == (2, 2)
    # softmax rows sum to ~1 (approx EUP reciprocal => slightly relaxed tol), sigmoid in (0, 1)
    assert jnp.allclose(jnp.sum(d1, axis=1), 1.0, atol=2e-3)
    assert jnp.allclose(jnp.sum(d2, axis=1), 1.0, atol=2e-3)
    assert bool(jnp.all((out > 0.0) & (out < 1.0)))
    print("KERNEL_OK")
</pallas_src>

<mosaic_0001>
module attributes {stable_mosaic.version = 11 : i64} {
  func.func @_conv_pool_kernel(%arg0: i32, %arg1: memref<576x25xf32, #tpu.memory_space<vmem>>, %arg2: memref<25x32xf32, #tpu.memory_space<vmem>>, %arg3: memref<1x32xf32, #tpu.memory_space<vmem>>, %arg4: memref<144x32xf32, #tpu.memory_space<vmem>>) attributes {dimension_semantics = [#tpu.dimension_semantics<arbitrary>], iteration_bounds = array<i64: 1>, scalar_prefetch = 0 : i64, scratch_operands = 0 : i64, tpu.core_type = #tpu.core_type<tc>, window_params = [{pipeline_mode = #tpu.pipeline_mode<synchronous>, transform_indices = @transform_0, window_bounds = array<i64: 576, 25>}, {pipeline_mode = #tpu.pipeline_mode<synchronous>, transform_indices = @transform_1, window_bounds = array<i64: 25, 32>}, {pipeline_mode = #tpu.pipeline_mode<synchronous>, transform_indices = @transform_2, window_bounds = array<i64: 1, 32>}, {pipeline_mode = #tpu.pipeline_mode<synchronous>, transform_indices = @transform_3, window_bounds = array<i64: 144, 32>}]} {
    %c0 = arith.constant 0 : index
    %c0_0 = arith.constant 0 : index
    %0 = vector.load %arg1[%c0, %c0_0] : memref<576x25xf32, #tpu.memory_space<vmem>>, vector<576x25xf32>
    %c0_1 = arith.constant 0 : index
    %c0_2 = arith.constant 0 : index
    %1 = vector.load %arg2[%c0_1, %c0_2] : memref<25x32xf32, #tpu.memory_space<vmem>>, vector<25x32xf32>
    %cst = arith.constant dense<0.000000e+00> : vector<576x32xf32>
    %2 = tpu.matmul %0, %1, %cst {dimension_numbers = #tpu.dot_dimension_numbers<[1], [0], [0], [1], [0, 0, 1, 1], [], []>} : vector<576x25xf32>, vector<25x32xf32>, vector<576x32xf32> -> vector<576x32xf32>
    %3 = vector.extract_strided_slice %2 {offsets = [0, 0], sizes = [144, 32], strides = [1, 1]} : vector<576x32xf32> to vector<144x32xf32>
    %4 = vector.extract_strided_slice %2 {offsets = [144, 0], sizes = [144, 32], strides = [1, 1]} : vector<576x32xf32> to vector<144x32xf32>
    %5 = arith.maximumf %3, %4 : vector<144x32xf32>
    %6 = vector.extract_strided_slice %2 {offsets = [288, 0], sizes = [144, 32], strides = [1, 1]} : vector<576x32xf32> to vector<144x32xf32>
    %7 = vector.extract_strided_slice %2 {offsets = [432, 0], sizes = [144, 32], strides = [1, 1]} : vector<576x32xf32> to vector<144x32xf32>
    %8 = arith.maximumf %6, %7 : vector<144x32xf32>
    %9 = arith.maximumf %5, %8 : vector<144x32xf32>
    %c0_3 = arith.constant 0 : index
    %c0_4 = arith.constant 0 : index
    %10 = vector.load %arg3[%c0_3, %c0_4] : memref<1x32xf32, #tpu.memory_space<vmem>>, vector<1x32xf32>
    %11 = vector.broadcast %10 : vector<1x32xf32> to vector<144x32xf32>
    %12 = arith.addf %9, %11 : vector<144x32xf32>
    %cst_5 = arith.constant 0.000000e+00 : f32
    %13 = vector.broadcast %cst_5 : f32 to vector<144x32xf32>
    %14 = arith.maximumf %12, %13 : vector<144x32xf32>
    %c0_6 = arith.constant 0 : index
    %c0_7 = arith.constant 0 : index
    %15 = vector.load %arg4[%c0_6, %c0_7] : memref<144x32xf32, #tpu.memory_space<vmem>>, vector<144x32xf32>
    tpu.vector_store %arg4[%c0_6, %c0_7], %14 {strides = array<i32>} : memref<144x32xf32, #tpu.memory_space<vmem>>, vector<144x32xf32>,
    return
  }
  func.func @transform_0(%arg0: i32) -> (i32, i32) {
    %c0_i32 = arith.constant 0 : i32
    %c0_i32_0 = arith.constant 0 : i32
    %c0_i32_1 = arith.constant 0 : i32
    return %c0_i32, %c0_i32_0 : i32, i32
  }
  func.func @transform_1(%arg0: i32) -> (i32, i32) {
    %c0_i32 = arith.constant 0 : i32
    %c0_i32_0 = arith.constant 0 : i32
    %c0_i32_1 = arith.constant 0 : i32
    return %c0_i32, %c0_i32_0 : i32, i32
  }
  func.func @transform_2(%arg0: i32) -> (i32, i32) {
    %c0_i32 = arith.constant 0 : i32
    %c0_i32_0 = arith.constant 0 : i32
    %c0_i32_1 = arith.constant 0 : i32
    return %c0_i32, %c0_i32_0 : i32, i32
  }
  func.func @transform_3(%arg0: i32) -> (i32, i32) {
    %c0_i32 = arith.constant 0 : i32
    %c0_i32_0 = arith.constant 0 : i32
    %c0_i32_1 = arith.constant 0 : i32
    return %c0_i32, %c0_i32_0 : i32, i32
  }
}

module attributes {stable_mosaic.version = 11 : i64} {
  func.func @_conv_pool_kernel(%arg0: i32, %arg1: memref<64x800xf32, #tpu.memory_space<vmem>>, %arg2: memref<800x64xf32, #tpu.memory_space<vmem>>, %arg3: memref<1x64xf32, #tpu.memory_space<vmem>>, %arg4: memref<16x64xf32, #tpu.memory_space<vmem>>) attributes {dimension_semantics = [#tpu.dimension_semantics<arbitrary>], iteration_bounds = array<i64: 1>, scalar_prefetch = 0 : i64, scratch_operands = 0 : i64, tpu.core_type = #tpu.core_type<tc>, window_params = [{pipeline_mode = #tpu.pipeline_mode<synchronous>, transform_indices = @transform_0, window_bounds = array<i64: 64, 800>}, {pipeline_mode = #tpu.pipeline_mode<synchronous>, transform_indices = @transform_1, window_bounds = array<i64: 800, 64>}, {pipeline_mode = #tpu.pipeline_mode<synchronous>, transform_indices = @transform_2, window_bounds = array<i64: 1, 64>}, {pipeline_mode = #tpu.pipeline_mode<synchronous>, transform_indices = @transform_3, window_bounds = array<i64: 16, 64>}]} {
    %c0 = arith.constant 0 : index
    %c0_0 = arith.constant 0 : index
    %0 = vector.load %arg1[%c0, %c0_0] : memref<64x800xf32, #tpu.memory_space<vmem>>, vector<64x800xf32>
    %c0_1 = arith.constant 0 : index
    %c0_2 = arith.constant 0 : index
    %1 = vector.load %arg2[%c0_1, %c0_2] : memref<800x64xf32, #tpu.memory_space<vmem>>, vector<800x64xf32>
    %cst = arith.constant dense<0.000000e+00> : vector<64x64xf32>
    %2 = tpu.matmul %0, %1, %cst {dimension_numbers = #tpu.dot_dimension_numbers<[1], [0], [0], [1], [0, 0, 1, 1], [], []>} : vector<64x800xf32>, vector<800x64xf32>, vector<64x64xf32> -> vector<64x64xf32>
    %3 = vector.extract_strided_slice %2 {offsets = [0, 0], sizes = [16, 64], strides = [1, 1]} : vector<64x64xf32> to vector<16x64xf32>
    %4 = vector.extract_strided_slice %2 {offsets = [16, 0], sizes = [16, 64], strides = [1, 1]} : vector<64x64xf32> to vector<16x64xf32>
    %5 = arith.maximumf %3, %4 : vector<16x64xf32>
    %6 = vector.extract_strided_slice %2 {offsets = [32, 0], sizes = [16, 64], strides = [1, 1]} : vector<64x64xf32> to vector<16x64xf32>
    %7 = vector.extract_strided_slice %2 {offsets = [48, 0], sizes = [16, 64], strides = [1, 1]} : vector<64x64xf32> to vector<16x64xf32>
    %8 = arith.maximumf %6, %7 : vector<16x64xf32>
    %9 = arith.maximumf %5, %8 : vector<16x64xf32>
    %c0_3 = arith.constant 0 : index
    %c0_4 = arith.constant 0 : index
    %10 = vector.load %arg3[%c0_3, %c0_4] : memref<1x64xf32, #tpu.memory_space<vmem>>, vector<1x64xf32>
    %11 = vector.broadcast %10 : vector<1x64xf32> to vector<16x64xf32>
    %12 = arith.addf %9, %11 : vector<16x64xf32>
    %cst_5 = arith.constant 0.000000e+00 : f32
    %13 = vector.broadcast %cst_5 : f32 to vector<16x64xf32>
    %14 = arith.maximumf %12, %13 : vector<16x64xf32>
    %c0_6 = arith.constant 0 : index
    %c0_7 = arith.constant 0 : index
    %15 = vector.load %arg4[%c0_6, %c0_7] : memref<16x64xf32, #tpu.memory_space<vmem>>, vector<16x64xf32>
    tpu.vector_store %arg4[%c0_6, %c0_7], %14 {strides = array<i32>} : memref<16x64xf32, #tpu.memory_space<vmem>>, vector<16x64xf32>,
    return
  }
  func.func @transform_0(%arg0: i32) -> (i32, i32) {
    %c0_i32 = arith.constant 0 : i32
    %c0_i32_0 = arith.constant 0 : i32
    %c0_i32_1 = arith.constant 0 : i32
    return %c0_i32, %c0_i32_0 : i32, i32
  }
  func.func @transform_1(%arg0: i32) -> (i32, i32) {
    %c0_i32 = arith.constant 0 : i32
    %c0_i32_0 = arith.constant 0 : i32
    %c0_i32_1 = arith.constant 0 : i32
    return %c0_i32, %c0_i32_0 : i32, i32
  }
  func.func @transform_2(%arg0: i32) -> (i32, i32) {
    %c0_i32 = arith.constant 0 : i32
    %c0_i32_0 = arith.constant 0 : i32
    %c0_i32_1 = arith.constant 0 : i32
    return %c0_i32, %c0_i32_0 : i32, i32
  }
  func.func @transform_3(%arg0: i32) -> (i32, i32) {
    %c0_i32 = arith.constant 0 : i32
    %c0_i32_0 = arith.constant 0 : i32
    %c0_i32_1 = arith.constant 0 : i32
    return %c0_i32, %c0_i32_0 : i32, i32
  }
}

module attributes {stable_mosaic.version = 11 : i64} {
  func.func @_head_kernel(%arg0: i32, %arg1: memref<4x256xf32, #tpu.memory_space<vmem>>, %arg2: memref<256x64xf32, #tpu.memory_space<vmem>>, %arg3: memref<1x64xf32, #tpu.memory_space<vmem>>, %arg4: memref<64x10xf32, #tpu.memory_space<vmem>>, %arg5: memref<1x10xf32, #tpu.memory_space<vmem>>, %arg6: memref<10x2xf32, #tpu.memory_space<vmem>>, %arg7: memref<10x2xf32, #tpu.memory_space<vmem>>, %arg8: memref<1x2xf32, #tpu.memory_space<vmem>>, %arg9: memref<4x10xf32, #tpu.memory_space<vmem>>, %arg10: memref<2x2xf32, #tpu.memory_space<vmem>>) attributes {dimension_semantics = [#tpu.dimension_semantics<arbitrary>], iteration_bounds = array<i64: 1>, scalar_prefetch = 0 : i64, scratch_operands = 0 : i64, tpu.core_type = #tpu.core_type<tc>, window_params = [{pipeline_mode = #tpu.pipeline_mode<synchronous>, transform_indices = @transform_0, window_bounds = array<i64: 4, 256>}, {pipeline_mode = #tpu.pipeline_mode<synchronous>, transform_indices = @transform_1, window_bounds = array<i64: 256, 64>}, {pipeline_mode = #tpu.pipeline_mode<synchronous>, transform_indices = @transform_2, window_bounds = array<i64: 1, 64>}, {pipeline_mode = #tpu.pipeline_mode<synchronous>, transform_indices = @transform_3, window_bounds = array<i64: 64, 10>}, {pipeline_mode = #tpu.pipeline_mode<synchronous>, transform_indices = @transform_4, window_bounds = array<i64: 1, 10>}, {pipeline_mode = #tpu.pipeline_mode<synchronous>, transform_indices = @transform_5, window_bounds = array<i64: 10, 2>}, {pipeline_mode = #tpu.pipeline_mode<synchronous>, transform_indices = @transform_6, window_bounds = array<i64: 10, 2>}, {pipeline_mode = #tpu.pipeline_mode<synchronous>, transform_indices = @transform_7, window_bounds = array<i64: 1, 2>}, {pipeline_mode = #tpu.pipeline_mode<synchronous>, transform_indices = @transform_8, window_bounds = array<i64: 4, 10>}, {pipeline_mode = #tpu.pipeline_mode<synchronous>, transform_indices = @transform_9, window_bounds = array<i64: 2, 2>}]} {
    %c0 = arith.constant 0 : index
    %c0_0 = arith.constant 0 : index
    %0 = vector.load %arg1[%c0, %c0_0] : memref<4x256xf32, #tpu.memory_space<vmem>>, vector<4x256xf32>
    %c0_1 = arith.constant 0 : index
    %c0_2 = arith.constant 0 : index
    %1 = vector.load %arg2[%c0_1, %c0_2] : memref<256x64xf32, #tpu.memory_space<vmem>>, vector<256x64xf32>
    %cst = arith.constant dense<0.000000e+00> : vector<4x64xf32>
    %2 = tpu.matmul %0, %1, %cst {dimension_numbers = #tpu.dot_dimension_numbers<[1], [0], [0], [1], [0, 0, 1, 1], [], []>} : vector<4x256xf32>, vector<256x64xf32>, vector<4x64xf32> -> vector<4x64xf32>
    %c0_3 = arith.constant 0 : index
    %c0_4 = arith.constant 0 : index
    %3 = vector.load %arg3[%c0_3, %c0_4] : memref<1x64xf32, #tpu.memory_space<vmem>>, vector<1x64xf32>
    %4 = vector.broadcast %3 : vector<1x64xf32> to vector<4x64xf32>
    %5 = arith.addf %2, %4 : vector<4x64xf32>
    %cst_5 = arith.constant 0.000000e+00 : f32
    %6 = vector.broadcast %cst_5 : f32 to vector<4x64xf32>
    %7 = arith.maximumf %5, %6 : vector<4x64xf32>
    %c0_6 = arith.constant 0 : index
    %c0_7 = arith.constant 0 : index
    %8 = vector.load %arg4[%c0_6, %c0_7] : memref<64x10xf32, #tpu.memory_space<vmem>>, vector<64x10xf32>
    %cst_8 = arith.constant dense<0.000000e+00> : vector<4x10xf32>
    %9 = tpu.matmul %7, %8, %cst_8 {dimension_numbers = #tpu.dot_dimension_numbers<[1], [0], [0], [1], [0, 0, 1, 1], [], []>} : vector<4x64xf32>, vector<64x10xf32>, vector<4x10xf32> -> vector<4x10xf32>
    %c0_9 = arith.constant 0 : index
    %c0_10 = arith.constant 0 : index
    %10 = vector.load %arg5[%c0_9, %c0_10] : memref<1x10xf32, #tpu.memory_space<vmem>>, vector<1x10xf32>
    %11 = vector.broadcast %10 : vector<1x10xf32> to vector<4x10xf32>
    %12 = arith.addf %9, %11 : vector<4x10xf32>
    %cst_11 = arith.constant dense<0xFF800000> : vector<4xf32>
    %13 = vector.multi_reduction <maximumf>, %12, %cst_11 [1] : vector<4x10xf32> to vector<4xf32>
    %14 = vector.shape_cast %13 : vector<4xf32> to vector<4x1xf32>
    %15 = vector.broadcast %14 : vector<4x1xf32> to vector<4x10xf32>
    %16 = arith.subf %12, %15 : vector<4x10xf32>
    %17 = math.exp %16 : vector<4x10xf32>
    %cst_12 = arith.constant dense<0.000000e+00> : vector<4xf32>
    %18 = vector.multi_reduction <add>, %17, %cst_12 [1] : vector<4x10xf32> to vector<4xf32>
    %19 = vector.shape_cast %18 : vector<4xf32> to vector<4x1xf32>
    %20 = tpu.reciprocal %19 {approx = true} : vector<4x1xf32> -> vector<4x1xf32>
    %21 = vector.broadcast %20 : vector<4x1xf32> to vector<4x10xf32>
    %22 = arith.mulf %17, %21 : vector<4x10xf32>
    %c0_13 = arith.constant 0 : index
    %c0_14 = arith.constant 0 : index
    %23 = vector.load %arg9[%c0_13, %c0_14] : memref<4x10xf32, #tpu.memory_space<vmem>>, vector<4x10xf32>
    tpu.vector_store %arg9[%c0_13, %c0_14], %22 {strides = array<i32>} : memref<4x10xf32, #tpu.memory_space<vmem>>, vector<4x10xf32>,
    %24 = vector.extract_strided_slice %22 {offsets = [0, 0], sizes = [2, 10], strides = [1, 1]} : vector<4x10xf32> to vector<2x10xf32>
    %25 = vector.extract_strided_slice %22 {offsets = [2, 0], sizes = [2, 10], strides = [1, 1]} : vector<4x10xf32> to vector<2x10xf32>
    %c0_15 = arith.constant 0 : index
    %c0_16 = arith.constant 0 : index
    %26 = vector.load %arg6[%c0_15, %c0_16] : memref<10x2xf32, #tpu.memory_space<vmem>>, vector<10x2xf32>
    %cst_17 = arith.constant dense<0.000000e+00> : vector<2x2xf32>
    %27 = tpu.matmul %24, %26, %cst_17 {dimension_numbers = #tpu.dot_dimension_numbers<[1], [0], [0], [1], [0, 0, 1, 1], [], []>} : vector<2x10xf32>, vector<10x2xf32>, vector<2x2xf32> -> vector<2x2xf32>
    %c0_18 = arith.constant 0 : index
    %c0_19 = arith.constant 0 : index
    %28 = vector.load %arg7[%c0_18, %c0_19] : memref<10x2xf32, #tpu.memory_space<vmem>>, vector<10x2xf32>
    %cst_20 = arith.constant dense<0.000000e+00> : vector<2x2xf32>
    %29 = tpu.matmul %25, %28, %cst_20 {dimension_numbers = #tpu.dot_dimension_numbers<[1], [0], [0], [1], [0, 0, 1, 1], [], []>} : vector<2x10xf32>, vector<10x2xf32>, vector<2x2xf32> -> vector<2x2xf32>
    %30 = arith.addf %27, %29 : vector<2x2xf32>
    %c0_21 = arith.constant 0 : index
    %c0_22 = arith.constant 0 : index
    %31 = vector.load %arg8[%c0_21, %c0_22] : memref<1x2xf32, #tpu.memory_space<vmem>>, vector<1x2xf32>
    %32 = vector.broadcast %31 : vector<1x2xf32> to vector<2x2xf32>
    %33 = arith.addf %30, %32 : vector<2x2xf32>
    %cst_23 = arith.constant 0.000000e+00 : f32
    %34 = vector.broadcast %cst_23 : f32 to vector<2x2xf32>
    %35 = arith.subf %34, %33 : vector<2x2xf32>
    %36 = math.exp %35 : vector<2x2xf32>
    %cst_24 = arith.constant 1.000000e+00 : f32
    %37 = vector.broadcast %cst_24 : f32 to vector<2x2xf32>
    %38 = arith.addf %37, %36 : vector<2x2xf32>
    %39 = tpu.reciprocal %38 {approx = true} : vector<2x2xf32> -> vector<2x2xf32>
    %c0_25 = arith.constant 0 : index
    %c0_26 = arith.constant 0 : index
    %40 = vector.load %arg10[%c0_25, %c0_26] : memref<2x2xf32, #tpu.memory_space<vmem>>, vector<2x2xf32>
    tpu.vector_store %arg10[%c0_25, %c0_26], %39 {strides = array<i32>} : memref<2x2xf32, #tpu.memory_space<vmem>>, vector<2x2xf32>,
    return
  }
  func.func @transform_0(%arg0: i32) -> (i32, i32) {
    %c0_i32 = arith.constant 0 : i32
    %c0_i32_0 = arith.constant 0 : i32
    %c0_i32_1 = arith.constant 0 : i32
    return %c0_i32, %c0_i32_0 : i32, i32
  }
  func.func @transform_1(%arg0: i32) -> (i32, i32) {
    %c0_i32 = arith.constant 0 : i32
    %c0_i32_0 = arith.constant 0 : i32
    %c0_i32_1 = arith.constant 0 : i32
    return %c0_i32, %c0_i32_0 : i32, i32
  }
  func.func @transform_2(%arg0: i32) -> (i32, i32) {
    %c0_i32 = arith.constant 0 : i32
    %c0_i32_0 = arith.constant 0 : i32
    %c0_i32_1 = arith.constant 0 : i32
    return %c0_i32, %c0_i32_0 : i32, i32
  }
  func.func @transform_3(%arg0: i32) -> (i32, i32) {
    %c0_i32 = arith.constant 0 : i32
    %c0_i32_0 = arith.constant 0 : i32
    %c0_i32_1 = arith.constant 0 : i32
    return %c0_i32, %c0_i32_0 : i32, i32
  }
  func.func @transform_4(%arg0: i32) -> (i32, i32) {
    %c0_i32 = arith.constant 0 : i32
    %c0_i32_0 = arith.constant 0 : i32
    %c0_i32_1 = arith.constant 0 : i32
    return %c0_i32, %c0_i32_0 : i32, i32
  }
  func.func @transform_5(%arg0: i32) -> (i32, i32) {
    %c0_i32 = arith.constant 0 : i32
    %c0_i32_0 = arith.constant 0 : i32
    %c0_i32_1 = arith.constant 0 : i32
    return %c0_i32, %c0_i32_0 : i32, i32
  }
  func.func @transform_6(%arg0: i32) -> (i32, i32) {
    %c0_i32 = arith.constant 0 : i32
    %c0_i32_0 = arith.constant 0 : i32
    %c0_i32_1 = arith.constant 0 : i32
    return %c0_i32, %c0_i32_0 : i32, i32
  }
  func.func @transform_7(%arg0: i32) -> (i32, i32) {
    %c0_i32 = arith.constant 0 : i32
    %c0_i32_0 = arith.constant 0 : i32
    %c0_i32_1 = arith.constant 0 : i32
    return %c0_i32, %c0_i32_0 : i32, i32
  }
  func.func @transform_8(%arg0: i32) -> (i32, i32) {
    %c0_i32 = arith.constant 0 : i32
    %c0_i32_0 = arith.constant 0 : i32
    %c0_i32_1 = arith.constant 0 : i32
    return %c0_i32, %c0_i32_0 : i32, i32
  }
  func.func @transform_9(%arg0: i32) -> (i32, i32) {
    %c0_i32 = arith.constant 0 : i32
    %c0_i32_0 = arith.constant 0 : i32
    %c0_i32_1 = arith.constant 0 : i32
    return %c0_i32, %c0_i32_0 : i32, i32
  }
}

</mosaic_0001>

<llo_original>
// kernel: _lambda_.3
$region0: #{_lambda_.3}
  #allocation0 [shape = 'u32[]', space=smem, size = 0x4, offset = 0x4, fixed_abs, tag = 'smem constant byte address 0x4 - core index']
  #allocation1 [shape = 'u32[144,128]{1,0:T(1,128)}', space=vmem, size = 0x12000, scoped, tag = 'internal scratch']
  %s0 = inlined_call_operand.vmem [shape: f32[576,25], index: 0, kind: input, shape index: {}]
  %s1 = inlined_call_operand.vmem [shape: f32[25,32], index: 1, kind: input, shape index: {}]
  %s2 = inlined_call_operand.vmem [shape: f32[1,32], index: 2, kind: input, shape index: {}]
  %s3 = inlined_call_operand.vmem [shape: f32[144,32], index: 3, kind: output, shape index: {}]
  %s4 = sld [smem:[#allocation0]]
  $region22: #{_lambda_.3} parent=0
    _
  %s6 = ssub.s32 1, %s4
  %s7 = scalar_select 0, %s6, %s4
  // Predicated region
  $region2: #{_lambda_.3} parent=0 // pred_check
    _
  $region3: #{_lambda_.3} parent=0 // pred_check_branch
    %9 = sbr.rel (0) target = $region5
  $region4: #{_lambda_.3} parent=0 // pred_region
    _
  $region5: #{_lambda_.3} parent=0 // pred_fallthru
    _
  // Predicated region
  $region6: #{_lambda_.3} parent=0 // pred_check
    _
  $region7: #{_lambda_.3} parent=0 // pred_check_branch
    %11 = sbr.rel (0) target = $region9
  $region8: #{_lambda_.3} parent=0 // pred_region
    _
  $region9: #{_lambda_.3} parent=0 // pred_fallthru
    _
  // Predicated region
  $region10: #{_lambda_.3} parent=0 // pred_check
    _
  $region11: #{_lambda_.3} parent=0 // pred_check_branch
    %13 = sbr.rel (0) target = $region13
  $region12: #{_lambda_.3} parent=0 // pred_region
    _
  $region13: #{_lambda_.3} parent=0 // pred_fallthru
    _
  %v14 = vld [vmem:[%s0] sm:$0xff]
  %v15 = vld [vmem:[%s0 + $0x8] sm:$0xff]
  %v16 = vld [vmem:[%s0 + $0x10] sm:$0xff]
  %v17 = vld [vmem:[%s0 + $0x18] sm:$0xff]
  %v18 = vld [vmem:[%s0 + $0x20] sm:$0xff]
  %v19 = vld [vmem:[%s0 + $0x28] sm:$0xff]
  %v20 = vld [vmem:[%s0 + $0x30] sm:$0xff]
  %v21 = vld [vmem:[%s0 + $0x38] sm:$0xff]
  %v22 = vld [vmem:[%s0 + $0x40] sm:$0xff]
  %v23 = vld [vmem:[%s0 + $0x48] sm:$0xff]
  %v24 = vld [vmem:[%s0 + $0x50] sm:$0xff]
  %v25 = vld [vmem:[%s0 + $0x58] sm:$0xff]
  %v26 = vld [vmem:[%s0 + $0x60] sm:$0xff]
  %v27 = vld [vmem:[%s0 + $0x68] sm:$0xff]
  %v28 = vld [vmem:[%s0 + $0x70] sm:$0xff]
  %v29 = vld [vmem:[%s0 + $0x78] sm:$0xff]
  %v30 = vld [vmem:[%s0 + $0x80] sm:$0xff]
  %v31 = vld [vmem:[%s0 + $0x88] sm:$0xff]
  %v32 = vld [vmem:[%s0 + $0x90] sm:$0xff]
  %v33 = vld [vmem:[%s0 + $0x98] sm:$0xff]
  %v34 = vld [vmem:[%s0 + $0xa0] sm:$0xff]
  %v35 = vld [vmem:[%s0 + $0xa8] sm:$0xff]
  %v36 = vld [vmem:[%s0 + $0xb0] sm:$0xff]
  %v37 = vld [vmem:[%s0 + $0xb8] sm:$0xff]
  %v38 = vld [vmem:[%s0 + $0xc0] sm:$0xff]
  %v39 = vld [vmem:[%s0 + $0xc8] sm:$0xff]
  %v40 = vld [vmem:[%s0 + $0xd0] sm:$0xff]
  %v41 = vld [vmem:[%s0 + $0xd8] sm:$0xff]
  %v42 = vld [vmem:[%s0 + $0xe0] sm:$0xff]
  %v43 = vld [vmem:[%s0 + $0xe8] sm:$0xff]
  %v44 = vld [vmem:[%s0 + $0xf0] sm:$0xff]
  %v45 = vld [vmem:[%s0 + $0xf8] sm:$0xff]
  %v46 = vld [vmem:[%s0 + $0x100] sm:$0xff]
  %v47 = vld [vmem:[%s0 + $0x108] sm:$0xff]
  %v48 = vld [vmem:[%s0 + $0x110] sm:$0xff]
  %v49 = vld [vmem:[%s0 + $0x118] sm:$0xff]
  %v50 = vld [vmem:[%s0 + $0x120] sm:$0xff]
  %v51 = vld [vmem:[%s0 + $0x128] sm:$0xff]
  %v52 = vld [vmem:[%s0 + $0x130] sm:$0xff]
  %v53 = vld [vmem:[%s0 + $0x138] sm:$0xff]
  %v54 = vld [vmem:[%s0 + $0x140] sm:$0xff]
  %v55 = vld [vmem:[%s0 + $0x148] sm:$0xff]
  %v56 = vld [vmem:[%s0 + $0x150] sm:$0xff]
  %v57 = vld [vmem:[%s0 + $0x158] sm:$0xff]
  %v58 = vld [vmem:[%s0 + $0x160] sm:$0xff]
  %v59 = vld [vmem:[%s0 + $0x168] sm:$0xff]
  %v60 = vld [vmem:[%s0 + $0x170] sm:$0xff]
  %v61 = vld [vmem:[%s0 + $0x178] sm:$0xff]
  %v62 = vld [vmem:[%s0 + $0x180] sm:$0xff]
  %v63 = vld [vmem:[%s0 + $0x188] sm:$0xff]
  %v64 = vld [vmem:[%s0 + $0x190] sm:$0xff]
  %v65 = vld [vmem:[%s0 + $0x198] sm:$0xff]
  %v66 = vld [vmem:[%s0 + $0x1a0] sm:$0xff]
  %v67 = vld [vmem:[%s0 + $0x1a8] sm:$0xff]
  %v68 = vld [vmem:[%s0 + $0x1b0] sm:$0xff]
  %v69 = vld [vmem:[%s0 + $0x1b8] sm:$0xff]
  %v70 = vld [vmem:[%s0 + $0x1c0] sm:$0xff]
  %v71 = vld [vmem:[%s0 + $0x1c8] sm:$0xff]
  %v72 = vld [vmem:[%s0 + $0x1d0] sm:$0xff]
  %v73 = vld [vmem:[%s0 + $0x1d8] sm:$0xff]
  %v74 = vld [vmem:[%s0 + $0x1e0] sm:$0xff]
  %v75 = vld [vmem:[%s0 + $0x1e8] sm:$0xff]
  %v76 = vld [vmem:[%s0 + $0x1f0] sm:$0xff]
  %v77 = vld [vmem:[%s0 + $0x1f8] sm:$0xff]
  %v78 = vld [vmem:[%s0 + $0x200] sm:$0xff]
  %v79 = vld [vmem:[%s0 + $0x208] sm:$0xff]
  %v80 = vld [vmem:[%s0 + $0x210] sm:$0xff]
  %v81 = vld [vmem:[%s0 + $0x218] sm:$0xff]
  %v82 = vld [vmem:[%s0 + $0x220] sm:$0xff]
  %v83 = vld [vmem:[%s0 + $0x228] sm:$0xff]
  %v84 = vld [vmem:[%s0 + $0x230] sm:$0xff]
  %v85 = vld [vmem:[%s0 + $0x238] sm:$0xff]
  %v86 = vld [vmem:[%s1] sm:$0xff]
  %v87 = vld [vmem:[%s1 + $0x8] sm:$0xff]
  %v88 = vld [vmem:[%s1 + $0x10] sm:$0xff]
  %v89 = vld [vmem:[%s1 + $0x18] sm:$0x1]
  %vm90 = vcmask 203776
  %v92 = vsel %vm90, %v14, 0
  %v95 = vsel %vm90, %v15, 0
  %v98 = vsel %vm90, %v16, 0
  %v101 = vsel %vm90, %v17, 0
  %v104 = vsel %vm90, %v18, 0
  %v107 = vsel %vm90, %v19, 0
  %v110 = vsel %vm90, %v20, 0
  %v113 = vsel %vm90, %v21, 0
  %v116 = vsel %vm90, %v22, 0
  %v119 = vsel %vm90, %v23, 0
  %v122 = vsel %vm90, %v24, 0
  %v125 = vsel %vm90, %v25, 0
  %v128 = vsel %vm90, %v26, 0
  %v131 = vsel %vm90, %v27, 0
  %v134 = vsel %vm90, %v28, 0
  %v137 = vsel %vm90, %v29, 0
  %v140 = vsel %vm90, %v30, 0
  %v143 = vsel %vm90, %v31, 0
  %v146 = vsel %vm90, %v32, 0
  %v149 = vsel %vm90, %v33, 0
  %v152 = vsel %vm90, %v34, 0
  %v155 = vsel %vm90, %v35, 0
  %v158 = vsel %vm90, %v36, 0
  %v161 = vsel %vm90, %v37, 0
  %v164 = vsel %vm90, %v38, 0
  %v167 = vsel %vm90, %v39, 0
  %v170 = vsel %vm90, %v40, 0
  %v173 = vsel %vm90, %v41, 0
  %v176 = vsel %vm90, %v42, 0
  %v179 = vsel %vm90, %v43, 0
  %v182 = vsel %vm90, %v44, 0
  %v185 = vsel %vm90, %v45, 0
  %v188 = vsel %vm90, %v46, 0
  %v191 = vsel %vm90, %v47, 0
  %v194 = vsel %vm90, %v48, 0
  %v197 = vsel %vm90, %v49, 0
  %v200 = vsel %vm90, %v50, 0
  %v203 = vsel %vm90, %v51, 0
  %v206 = vsel %vm90, %v52, 0
  %v209 = vsel %vm90, %v53, 0
  %v212 = vsel %vm90, %v54, 0
  %v215 = vsel %vm90, %v55, 0
  %v218 = vsel %vm90, %v56, 0
  %v221 = vsel %vm90, %v57, 0
  %v224 = vsel %vm90, %v58, 0
  %v227 = vsel %vm90, %v59, 0
  %v230 = vsel %vm90, %v60, 0
  %v233 = vsel %vm90, %v61, 0
  %v236 = vsel %vm90, %v62, 0
  %v239 = vsel %vm90, %v63, 0
  %v242 = vsel %vm90, %v64, 0
  %v245 = vsel %vm90, %v65, 0
  %v248 = vsel %vm90, %v66, 0
  %v251 = vsel %vm90, %v67, 0
  %v254 = vsel %vm90, %v68, 0
  %v257 = vsel %vm90, %v69, 0
  %v260 = vsel %vm90, %v70, 0
  %v263 = vsel %vm90, %v71, 0
  %v266 = vsel %vm90, %v72, 0
  %v269 = vsel %vm90, %v73, 0
  %v272 = vsel %vm90, %v74, 0
  %v275 = vsel %vm90, %v75, 0
  %v278 = vsel %vm90, %v76, 0
  %v281 = vsel %vm90, %v77, 0
  %v284 = vsel %vm90, %v78, 0
  %v287 = vsel %vm90, %v79, 0
  %v290 = vsel %vm90, %v80, 0
  %v293 = vsel %vm90, %v81, 0
  %v296 = vsel %vm90, %v82, 0
  %v299 = vsel %vm90, %v83, 0
  %v302 = vsel %vm90, %v84, 0
  %v305 = vsel %vm90, %v85, 0
  %vm307 = vcmask 1040384
  %v309 = vsel %vm307, %v89, 0
  %311 = vmatprep.subr.mxu0 0.0
  %312 = vmatpush1.msra.mxu0 0.0
  %313 = vmatprep.subr.mxu0 0.0
  %314 = vmatpush1.msra.mxu0 0.0
  %315 = vmatprep.subr.mxu0 0.0
  %316 = vmatpush1.msra.mxu0 0.0
  %317 = vmatprep.subr.mxu0 0.0
  %318 = vmatpush1.msra.mxu0 0.0
  %319 = vmatprep.subr.mxu0 0.0
  %320 = vmatpush1.msra.mxu0 0.0
  %321 = vmatprep.subr.mxu0 0.0
  %322 = vmatpush1.msra.mxu0 0.0
  %323 = vmatprep.subr.mxu0 0.0
  %324 = vmatpush1.msra.mxu0 0.0
  %325 = vmatprep.subr.mxu0 0.0
  %326 = vmatpush1.msra.mxu0 0.0
  %327 = vmatprep.subr.mxu0 0.0
  %328 = vmatpush1.msra.mxu0 0.0
  %329 = vmatprep.subr.mxu0 0.0
  %330 = vmatpush1.msra.mxu0 0.0
  %331 = vmatprep.subr.mxu0 0.0
  %332 = vmatpush1.msra.mxu0 0.0
  %333 = vmatprep.subr.mxu0 0.0
  %334 = vmatpush1.msra.mxu0 0.0
  %335 = vmatprep.subr.mxu0 0.0
  %336 = vmatpush1.msra.mxu0 %v309
  %337 = vmatprep.subr.mxu0 0.0
  %338 = vmatpush1.msra.mxu0 %v88
  %339 = vmatprep.subr.mxu0 0.0
  %340 = vmatpush1.msra.mxu0 %v87
  %341 = vmatprep.subr.mxu0 0.0
  %342 = vmatpush1.msra.mxu0 %v86
  %343 = vmatprep.subr.mxu0 0.0
  %344 = vmatpush2.msra.mxu0 0.0
  %345 = vmatprep.subr.mxu0 0.0
  %346 = vmatpush2.msra.mxu0 0.0
  %347 = vmatprep.subr.mxu0 0.0
  %348 = vmatpush2.msra.mxu0 0.0
  %349 = vmatprep.subr.mxu0 0.0
  %350 = vmatpush2.msra.mxu0 0.0
  %351 = vmatprep.subr.mxu0 0.0
  %352 = vmatpush2.msra.mxu0 0.0
  %353 = vmatprep.subr.mxu0 0.0
  %354 = vmatpush2.msra.mxu0 0.0
  %355 = vmatprep.subr.mxu0 0.0
  %356 = vmatpush2.msra.mxu0 0.0
  %357 = vmatprep.subr.mxu0 0.0
  %358 = vmatpush2.msra.mxu0 0.0
  %359 = vmatprep.subr.mxu0 0.0
  %360 = vmatpush2.msra.mxu0 0.0
  %361 = vmatprep.subr.mxu0 0.0
  %362 = vmatpush2.msra.mxu0 0.0
  %363 = vmatprep.subr.mxu0 0.0
  %364 = vmatpush2.msra.mxu0 0.0
  %365 = vmatprep.subr.mxu0 0.0
  %366 = vmatpush2.msra.mxu0 0.0
  %367 = vmatprep.subr.mxu0 0.0
  %368 = vmatpush2.msra.mxu0 0.0
  %369 = vmatprep.subr.mxu0 0.0
  %370 = vmatpush2.msra.mxu0 0.0
  %371 = vmatprep.subr.mxu0 0.0
  %372 = vmatpush2.msra.mxu0 0.0
  %373 = vmatprep.subr.mxu0 0.0
  %374 = vmatpush2.msra.mxu0 0.0
  %375 = vmatprep.mubr.f32.mxu0 0.0
  %376 = vmatmul.mubr.f32.gmra.mxu0 %v92
  %v377 = vpop.f32.mrf.mxu0
  %v378 = vadd.f32 0.0, %v377
  %v379 = vpop.f32.mrf.mxu0
  %380 = vmatprep.mubr.f32.mxu0 0.0
  %381 = vmatmul.mubr.f32.gmra.mxu0 %v95
  %v382 = vpop.f32.mrf.mxu0
  %v383 = vadd.f32 0.0, %v382
  %v384 = vpop.f32.mrf.mxu0
  %385 = vmatprep.mubr.f32.mxu0 0.0
  %386 = vmatmul.mubr.f32.gmra.mxu0 %v98
  %v387 = vpop.f32.mrf.mxu0
  %v388 = vadd.f32 0.0, %v387
  %v389 = vpop.f32.mrf.mxu0
  %390 = vmatprep.mubr.f32.mxu0 0.0
  %391 = vmatmul.mubr.f32.gmra.mxu0 %v101
  %v392 = vpop.f32.mrf.mxu0
  %v393 = vadd.f32 0.0, %v392
  %v394 = vpop.f32.mrf.mxu0
  %395 = vmatprep.mubr.f32.mxu0 0.0
  %396 = vmatmul.mubr.f32.gmra.mxu0 %v104
  %v397 = vpop.f32.mrf.mxu0
  %v398 = vadd.f32 0.0, %v397
  %v399 = vpop.f32.mrf.mxu0
  %400 = vmatprep.mubr.f32.mxu0 0.0
  %401 = vmatmul.mubr.f32.gmra.mxu0 %v107
  %v402 = vpop.f32.mrf.mxu0
  %v403 = vadd.f32 0.0, %v402
  %v404 = vpop.f32.mrf.mxu0
  %405 = vmatprep.mubr.f32.mxu0 0.0
  %406 = vmatmul.mubr.f32.gmra.mxu0 %v110
  %v407 = vpop.f32.mrf.mxu0
  %v408 = vadd.f32 0.0, %v407
  %v409 = vpop.f32.mrf.mxu0
  %410 = vmatprep.mubr.f32.mxu0 0.0
  %411 = vmatmul.mubr.f32.gmra.mxu0 %v113
  %v412 = vpop.f32.mrf.mxu0
  %v413 = vadd.f32 0.0, %v412
  %v414 = vpop.f32.mrf.mxu0
  %415 = vmatprep.mubr.f32.mxu0 0.0
  %416 = vmatmul.mubr.f32.gmra.mxu0 %v116
  %v417 = vpop.f32.mrf.mxu0
  %v418 = vadd.f32 0.0, %v417
  %v419 = vpop.f32.mrf.mxu0
  %420 = vmatprep.mubr.f32.mxu0 0.0
  %421 = vmatmul.mubr.f32.gmra.mxu0 %v119
  %v422 = vpop.f32.mrf.mxu0
  %v423 = vadd.f32 0.0, %v422
  %v424 = vpop.f32.mrf.mxu0
  %425 = vmatprep.mubr.f32.mxu0 0.0
  %426 = vmatmul.mubr.f32.gmra.mxu0 %v122
  %v427 = vpop.f32.mrf.mxu0
  %v428 = vadd.f32 0.0, %v427
  %v429 = vpop.f32.mrf.mxu0
  %430 = vmatprep.mubr.f32.mxu0 0.0
  %431 = vmatmul.mubr.f32.gmra.mxu0 %v125
  %v432 = vpop.f32.mrf.mxu0
  %v433 = vadd.f32 0.0, %v432
  %v434 = vpop.f32.mrf.mxu0
  %435 = vmatprep.mubr.f32.mxu0 0.0
  %436 = vmatmul.mubr.f32.gmra.mxu0 %v128
  %v437 = vpop.f32.mrf.mxu0
  %v438 = vadd.f32 0.0, %v437
  %v439 = vpop.f32.mrf.mxu0
  %440 = vmatprep.mubr.f32.mxu0 0.0
  %441 = vmatmul.mubr.f32.gmra.mxu0 %v131
  %v442 = vpop.f32.mrf.mxu0
  %v443 = vadd.f32 0.0, %v442
  %v444 = vpop.f32.mrf.mxu0
  %445 = vmatprep.mubr.f32.mxu0 0.0
  %446 = vmatmul.mubr.f32.gmra.mxu0 %v134
  %v447 = vpop.f32.mrf.mxu0
  %v448 = vadd.f32 0.0, %v447
  %v449 = vpop.f32.mrf.mxu0
  %450 = vmatprep.mubr.f32.mxu0 0.0
  %451 = vmatmul.mubr.f32.gmra.mxu0 %v137
  %v452 = vpop.f32.mrf.mxu0
  %v453 = vadd.f32 0.0, %v452
  %v454 = vpop.f32.mrf.mxu0
  %455 = vmatprep.mubr.f32.mxu0 0.0
  %456 = vmatmul.mubr.f32.gmra.mxu0 %v140
  %v457 = vpop.f32.mrf.mxu0
  %v458 = vadd.f32 0.0, %v457
  %v459 = vpop.f32.mrf.mxu0
  %460 = vmatprep.mubr.f32.mxu0 0.0
  %461 = vmatmul.mubr.f32.gmra.mxu0 %v143
  %v462 = vpop.f32.mrf.mxu0
  %v463 = vadd.f32 0.0, %v462
  %v464 = vpop.f32.mrf.mxu0
  %465 = vmatprep.mubr.f32.mxu0 0.0
  %466 = vmatmul.mubr.f32.gmra.mxu0 %v146
  %v467 = vpop.f32.mrf.mxu0
  %v468 = vadd.f32 0.0, %v467
  %v469 = vpop.f32.mrf.mxu0
  %470 = vmatprep.mubr.f32.mxu0 0.0
  %471 = vmatmul.mubr.f32.gmra.mxu0 %v149
  %v472 = vpop.f32.mrf.mxu0
  %v473 = vadd.f32 0.0, %v472
  %v474 = vpop.f32.mrf.mxu0
  %475 = vmatprep.mubr.f32.mxu0 0.0
  %476 = vmatmul.mubr.f32.gmra.mxu0 %v152
  %v477 = vpop.f32.mrf.mxu0
  %v478 = vadd.f32 0.0, %v477
  %v479 = vpop.f32.mrf.mxu0
  %480 = vmatprep.mubr.f32.mxu0 0.0
  %481 = vmatmul.mubr.f32.gmra.mxu0 %v155
  %v482 = vpop.f32.mrf.mxu0
  %v483 = vadd.f32 0.0, %v482
  %v484 = vpop.f32.mrf.mxu0
  %485 = vmatprep.mubr.f32.mxu0 0.0
  %486 = vmatmul.mubr.f32.gmra.mxu0 %v158
  %v487 = vpop.f32.mrf.mxu0
  %v488 = vadd.f32 0.0, %v487
  %v489 = vpop.f32.mrf.mxu0
  %490 = vmatprep.mubr.f32.mxu0 0.0
  %491 = vmatmul.mubr.f32.gmra.mxu0 %v161
  %v492 = vpop.f32.mrf.mxu0
  %v493 = vadd.f32 0.0, %v492
  %v494 = vpop.f32.mrf.mxu0
  %495 = vmatprep.mubr.f32.mxu0 0.0
  %496 = vmatmul.mubr.f32.gmra.mxu0 %v164
  %v497 = vpop.f32.mrf.mxu0
  %v498 = vadd.f32 0.0, %v497
  %v499 = vpop.f32.mrf.mxu0
  %500 = vmatprep.mubr.f32.mxu0 0.0
  %501 = vmatmul.mubr.f32.gmra.mxu0 %v167
  %v502 = vpop.f32.mrf.mxu0
  %v503 = vadd.f32 0.0, %v502
  %v504 = vpop.f32.mrf.mxu0
  %505 = vmatprep.mubr.f32.mxu0 0.0
  %506 = vmatmul.mubr.f32.gmra.mxu0 %v170
  %v507 = vpop.f32.mrf.mxu0
  %v508 = vadd.f32 0.0, %v507
  %v509 = vpop.f32.mrf.mxu0
  %510 = vmatprep.mubr.f32.mxu0 0.0
  %511 = vmatmul.mubr.f32.gmra.mxu0 %v173
  %v512 = vpop.f32.mrf.mxu0
  %v513 = vadd.f32 0.0, %v512
  %v514 = vpop.f32.mrf.mxu0
  %515 = vmatprep.mubr.f32.mxu0 0.0
  %516 = vmatmul.mubr.f32.gmra.mxu0 %v176
  %v517 = vpop.f32.mrf.mxu0
  %v518 = vadd.f32 0.0, %v517
  %v519 = vpop.f32.mrf.mxu0
  %520 = vmatprep.mubr.f32.mxu0 0.0
  %521 = vmatmul.mubr.f32.gmra.mxu0 %v179
  %v522 = vpop.f32.mrf.mxu0
  %v523 = vadd.f32 0.0, %v522
  %v524 = vpop.f32.mrf.mxu0
  %525 = vmatprep.mubr.f32.mxu0 0.0
  %526 = vmatmul.mubr.f32.gmra.mxu0 %v182
  %v527 = vpop.f32.mrf.mxu0
  %v528 = vadd.f32 0.0, %v527
  %v529 = vpop.f32.mrf.mxu0
  %530 = vmatprep.mubr.f32.mxu0 0.0
  %531 = vmatmul.mubr.f32.gmra.mxu0 %v185
  %v532 = vpop.f32.mrf.mxu0
  %v533 = vadd.f32 0.0, %v532
  %v534 = vpop.f32.mrf.mxu0
  %535 = vmatprep.mubr.f32.mxu0 0.0
  %536 = vmatmul.mubr.f32.gmra.mxu0 %v188
  %v537 = vpop.f32.mrf.mxu0
  %v538 = vadd.f32 0.0, %v537
  %v539 = vpop.f32.mrf.mxu0
  %540 = vmatprep.mubr.f32.mxu0 0.0
  %541 = vmatmul.mubr.f32.gmra.mxu0 %v191
  %v542 = vpop.f32.mrf.mxu0
  %v543 = vadd.f32 0.0, %v542
  %v544 = vpop.f32.mrf.mxu0
  %545 = vmatprep.mubr.f32.mxu0 0.0
  %546 = vmatmul.mubr.f32.gmra.mxu0 %v194
  %v547 = vpop.f32.mrf.mxu0
  %v548 = vadd.f32 0.0, %v547
  %v549 = vpop.f32.mrf.mxu0
  %550 = vmatprep.mubr.f32.mxu0 0.0
  %551 = vmatmul.mubr.f32.gmra.mxu0 %v197
  %v552 = vpop.f32.mrf.mxu0
  %v553 = vadd.f32 0.0, %v552
  %v554 = vpop.f32.mrf.mxu0
  %555 = vmatprep.mubr.f32.mxu0 0.0
  %556 = vmatmul.mubr.f32.gmra.mxu0 %v200
  %v557 = vpop.f32.mrf.mxu0
  %v558 = vadd.f32 0.0, %v557
  %v559 = vpop.f32.mrf.mxu0
  %560 = vmatprep.mubr.f32.mxu0 0.0
  %561 = vmatmul.mubr.f32.gmra.mxu0 %v203
  %v562 = vpop.f32.mrf.mxu0
  %v563 = vadd.f32 0.0, %v562
  %v564 = vpop.f32.mrf.mxu0
  %565 = vmatprep.mubr.f32.mxu0 0.0
  %566 = vmatmul.mubr.f32.gmra.mxu0 %v206
  %v567 = vpop.f32.mrf.mxu0
  %v568 = vadd.f32 0.0, %v567
  %v569 = vpop.f32.mrf.mxu0
  %570 = vmatprep.mubr.f32.mxu0 0.0
  %571 = vmatmul.mubr.f32.gmra.mxu0 %v209
  %v572 = vpop.f32.mrf.mxu0
  %v573 = vadd.f32 0.0, %v572
  %v574 = vpop.f32.mrf.mxu0
  %575 = vmatprep.mubr.f32.mxu0 0.0
  %576 = vmatmul.mubr.f32.gmra.mxu0 %v212
  %v577 = vpop.f32.mrf.mxu0
  %v578 = vadd.f32 0.0, %v577
  %v579 = vpop.f32.mrf.mxu0
  %580 = vmatprep.mubr.f32.mxu0 0.0
  %581 = vmatmul.mubr.f32.gmra.mxu0 %v215
  %v582 = vpop.f32.mrf.mxu0
  %v583 = vadd.f32 0.0, %v582
  %v584 = vpop.f32.mrf.mxu0
  %585 = vmatprep.mubr.f32.mxu0 0.0
  %586 = vmatmul.mubr.f32.gmra.mxu0 %v218
  %v587 = vpop.f32.mrf.mxu0
  %v588 = vadd.f32 0.0, %v587
  %v589 = vpop.f32.mrf.mxu0
  %590 = vmatprep.mubr.f32.mxu0 0.0
  %591 = vmatmul.mubr.f32.gmra.mxu0 %v221
  %v592 = vpop.f32.mrf.mxu0
  %v593 = vadd.f32 0.0, %v592
  %v594 = vpop.f32.mrf.mxu0
  %595 = vmatprep.mubr.f32.mxu0 0.0
  %596 = vmatmul.mubr.f32.gmra.mxu0 %v224
  %v597 = vpop.f32.mrf.mxu0
  %v598 = vadd.f32 0.0, %v597
  %v599 = vpop.f32.mrf.mxu0
  %600 = vmatprep.mubr.f32.mxu0 0.0
  %601 = vmatmul.mubr.f32.gmra.mxu0 %v227
  %v602 = vpop.f32.mrf.mxu0
  %v603 = vadd.f32 0.0, %v602
  %v604 = vpop.f32.mrf.mxu0
  %605 = vmatprep.mubr.f32.mxu0 0.0
  %606 = vmatmul.mubr.f32.gmra.mxu0 %v230
  %v607 = vpop.f32.mrf.mxu0
  %v608 = vadd.f32 0.0, %v607
  %v609 = vpop.f32.mrf.mxu0
  %610 = vmatprep.mubr.f32.mxu0 0.0
  %611 = vmatmul.mubr.f32.gmra.mxu0 %v233
  %v612 = vpop.f32.mrf.mxu0
  %v613 = vadd.f32 0.0, %v612
  %v614 = vpop.f32.mrf.mxu0
  %615 = vmatprep.mubr.f32.mxu0 0.0
  %616 = vmatmul.mubr.f32.gmra.mxu0 %v236
  %v617 = vpop.f32.mrf.mxu0
  %v618 = vadd.f32 0.0, %v617
  %v619 = vpop.f32.mrf.mxu0
  %620 = vmatprep.mubr.f32.mxu0 0.0
  %621 = vmatmul.mubr.f32.gmra.mxu0 %v239
  %v622 = vpop.f32.mrf.mxu0
  %v623 = vadd.f32 0.0, %v622
  %v624 = vpop.f32.mrf.mxu0
  %625 = vmatprep.mubr.f32.mxu0 0.0
  %626 = vmatmul.mubr.f32.gmra.mxu0 %v242
  %v627 = vpop.f32.mrf.mxu0
  %v628 = vadd.f32 0.0, %v627
  %v629 = vpop.f32.mrf.mxu0
  %630 = vmatprep.mubr.f32.mxu0 0.0
  %631 = vmatmul.mubr.f32.gmra.mxu0 %v245
  %v632 = vpop.f32.mrf.mxu0
  %v633 = vadd.f32 0.0, %v632
  %v634 = vpop.f32.mrf.mxu0
  %635 = vmatprep.mubr.f32.mxu0 0.0
  %636 = vmatmul.mubr.f32.gmra.mxu0 %v248
  %v637 = vpop.f32.mrf.mxu0
  %v638 = vadd.f32 0.0, %v637
  %v639 = vpop.f32.mrf.mxu0
  %640 = vmatprep.mubr.f32.mxu0 0.0
  %641 = vmatmul.mubr.f32.gmra.mxu0 %v251
  %v642 = vpop.f32.mrf.mxu0
  %v643 = vadd.f32 0.0, %v642
  %v644 = vpop.f32.mrf.mxu0
  %645 = vmatprep.mubr.f32.mxu0 0.0
  %646 = vmatmul.mubr.f32.gmra.mxu0 %v254
  %v647 = vpop.f32.mrf.mxu0
  %v648 = vadd.f32 0.0, %v647
  %v649 = vpop.f32.mrf.mxu0
  %650 = vmatprep.mubr.f32.mxu0 0.0
  %651 = vmatmul.mubr.f32.gmra.mxu0 %v257
  %v652 = vpop.f32.mrf.mxu0
  %v653 = vadd.f32 0.0, %v652
  %v654 = vpop.f32.mrf.mxu0
  %655 = vmatprep.mubr.f32.mxu0 0.0
  %656 = vmatmul.mubr.f32.gmra.mxu0 %v260
  %v657 = vpop.f32.mrf.mxu0
  %v658 = vadd.f32 0.0, %v657
  %v659 = vpop.f32.mrf.mxu0
  %660 = vmatprep.mubr.f32.mxu0 0.0
  %661 = vmatmul.mubr.f32.gmra.mxu0 %v263
  %v662 = vpop.f32.mrf.mxu0
  %v663 = vadd.f32 0.0, %v662
  %v664 = vpop.f32.mrf.mxu0
  %665 = vmatprep.mubr.f32.mxu0 0.0
  %666 = vmatmul.mubr.f32.gmra.mxu0 %v266
  %v667 = vpop.f32.mrf.mxu0
  %v668 = vadd.f32 0.0, %v667
  %v669 = vpop.f32.mrf.mxu0
  %670 = vmatprep.mubr.f32.mxu0 0.0
  %671 = vmatmul.mubr.f32.gmra.mxu0 %v269
  %v672 = vpop.f32.mrf.mxu0
  %v673 = vadd.f32 0.0, %v672
  %v674 = vpop.f32.mrf.mxu0
  %675 = vmatprep.mubr.f32.mxu0 0.0
  %676 = vmatmul.mubr.f32.gmra.mxu0 %v272
  %v677 = vpop.f32.mrf.mxu0
  %v678 = vadd.f32 0.0, %v677
  %v679 = vpop.f32.mrf.mxu0
  %680 = vmatprep.mubr.f32.mxu0 0.0
  %681 = vmatmul.mubr.f32.gmra.mxu0 %v275
  %v682 = vpop.f32.mrf.mxu0
  %v683 = vadd.f32 0.0, %v682
  %v684 = vpop.f32.mrf.mxu0
  %685 = vmatprep.mubr.f32.mxu0 0.0
  %686 = vmatmul.mubr.f32.gmra.mxu0 %v278
  %v687 = vpop.f32.mrf.mxu0
  %v688 = vadd.f32 0.0, %v687
  %v689 = vpop.f32.mrf.mxu0
  %690 = vmatprep.mubr.f32.mxu0 0.0
  %691 = vmatmul.mubr.f32.gmra.mxu0 %v281
  %v692 = vpop.f32.mrf.mxu0
  %v693 = vadd.f32 0.0, %v692
  %v694 = vpop.f32.mrf.mxu0
  %695 = vmatprep.mubr.f32.mxu0 0.0
  %696 = vmatmul.mubr.f32.gmra.mxu0 %v284
  %v697 = vpop.f32.mrf.mxu0
  %v698 = vadd.f32 0.0, %v697
  %v699 = vpop.f32.mrf.mxu0
  %700 = vmatprep.mubr.f32.mxu0 0.0
  %701 = vmatmul.mubr.f32.gmra.mxu0 %v287
  %v702 = vpop.f32.mrf.mxu0
  %v703 = vadd.f32 0.0, %v702
  %v704 = vpop.f32.mrf.mxu0
  %705 = vmatprep.mubr.f32.mxu0 0.0
  %706 = vmatmul.mubr.f32.gmra.mxu0 %v290
  %v707 = vpop.f32.mrf.mxu0
  %v708 = vadd.f32 0.0, %v707
  %v709 = vpop.f32.mrf.mxu0
  %710 = vmatprep.mubr.f32.mxu0 0.0
  %711 = vmatmul.mubr.f32.gmra.mxu0 %v293
  %v712 = vpop.f32.mrf.mxu0
  %v713 = vadd.f32 0.0, %v712
  %v714 = vpop.f32.mrf.mxu0
  %715 = vmatprep.mubr.f32.mxu0 0.0
  %716 = vmatmul.mubr.f32.gmra.mxu0 %v296
  %v717 = vpop.f32.mrf.mxu0
  %v718 = vadd.f32 0.0, %v717
  %v719 = vpop.f32.mrf.mxu0
  %720 = vmatprep.mubr.f32.mxu0 0.0
  %721 = vmatmul.mubr.f32.gmra.mxu0 %v299
  %v722 = vpop.f32.mrf.mxu0
  %v723 = vadd.f32 0.0, %v722
  %v724 = vpop.f32.mrf.mxu0
  %725 = vmatprep.mubr.f32.mxu0 0.0
  %726 = vmatmul.mubr.f32.gmra.mxu0 %v302
  %v727 = vpop.f32.mrf.mxu0
  %v728 = vadd.f32 0.0, %v727
  %v729 = vpop.f32.mrf.mxu0
  %730 = vmatprep.mubr.f32.mxu0 0.0
  %731 = vmatmul.mubr.f32.gmra.mxu0 %v305
  %v732 = vpop.f32.mrf.mxu0
  %v733 = vadd.f32 0.0, %v732
  %v734 = vpop.f32.mrf.mxu0
  %735 = vdwg.mxu0
  %v736 = vmax.f32 %v378, %v468
  %v737 = vmax.f32 %v383, %v473
  %v738 = vmax.f32 %v388, %v478
  %v739 = vmax.f32 %v393, %v483
  %v740 = vmax.f32 %v398, %v488
  %v741 = vmax.f32 %v403, %v493
  %v742 = vmax.f32 %v408, %v498
  %v743 = vmax.f32 %v413, %v503
  %v744 = vmax.f32 %v418, %v508
  %v745 = vmax.f32 %v423, %v513
  %v746 = vmax.f32 %v428, %v518
  %v747 = vmax.f32 %v433, %v523
  %v748 = vmax.f32 %v438, %v528
  %v749 = vmax.f32 %v443, %v533
  %v750 = vmax.f32 %v448, %v538
  %v751 = vmax.f32 %v453, %v543
  %v752 = vmax.f32 %v458, %v548
  %v753 = vmax.f32 %v463, %v553
  %v754 = vmax.f32 %v558, %v648
  %v755 = vmax.f32 %v563, %v653
  %v756 = vmax.f32 %v568, %v658
  %v757 = vmax.f32 %v573, %v663
  %v758 = vmax.f32 %v578, %v668
  %v759 = vmax.f32 %v583, %v673
  %v760 = vmax.f32 %v588, %v678
  %v761 = vmax.f32 %v593, %v683
  %v762 = vmax.f32 %v598, %v688
  %v763 = vmax.f32 %v603, %v693
  %v764 = vmax.f32 %v608, %v698
  %v765 = vmax.f32 %v613, %v703
  %v766 = vmax.f32 %v618, %v708
  %v767 = vmax.f32 %v623, %v713
  %v768 = vmax.f32 %v628, %v718
  %v769 = vmax.f32 %v633, %v723
  %v770 = vmax.f32 %v638, %v728
  %v771 = vmax.f32 %v643, %v733
  %v772 = vmax.f32 %v736, %v754
  %v773 = vmax.f32 %v737, %v755
  %v774 = vmax.f32 %v738, %v756
  %v775 = vmax.f32 %v739, %v757
  %v776 = vmax.f32 %v740, %v758
  %v777 = vmax.f32 %v741, %v759
  %v778 = vmax.f32 %v742, %v760
  %v779 = vmax.f32 %v743, %v761
  %v780 = vmax.f32 %v744, %v762
  %v781 = vmax.f32 %v745, %v763
  %v782 = vmax.f32 %v746, %v764
  %v783 = vmax.f32 %v747, %v765
  %v784 = vmax.f32 %v748, %v766
  %v785 = vmax.f32 %v749, %v767
  %v786 = vmax.f32 %v750, %v768
  %v787 = vmax.f32 %v751, %v769
  %v788 = vmax.f32 %v752, %v770
  %v789 = vmax.f32 %v753, %v771
  %v790 = vld [vmem:[%s2] sm:$0x1]
  %v792 = vlaneseq
  %v793 = vshrl.u32 %v792, 7
  %v794 = vsub.s32 0, %v793
  %v795 = vrot.slane %v790, %v794
  %v797 = vadd.f32 %v772, %v795
  %v798 = vadd.f32 %v773, %v795
  %v799 = vadd.f32 %v774, %v795
  %v800 = vadd.f32 %v775, %v795
  %v801 = vadd.f32 %v776, %v795
  %v802 = vadd.f32 %v777, %v795
  %v803 = vadd.f32 %v778, %v795
  %v804 = vadd.f32 %v779, %v795
  %v805 = vadd.f32 %v780, %v795
  %v806 = vadd.f32 %v781, %v795
  %v807 = vadd.f32 %v782, %v795
  %v808 = vadd.f32 %v783, %v795
  %v809 = vadd.f32 %v784, %v795
  %v810 = vadd.f32 %v785, %v795
  %v811 = vadd.f32 %v786, %v795
  %v812 = vadd.f32 %v787, %v795
  %v813 = vadd.f32 %v788, %v795
  %v814 = vadd.f32 %v789, %v795
  %v815 = vmax.f32 %v797, 0.0
  %v816 = vmax.f32 %v798, 0.0
  %v817 = vmax.f32 %v799, 0.0
  %v818 = vmax.f32 %v800, 0.0
  %v819 = vmax.f32 %v801, 0.0
  %v820 = vmax.f32 %v802, 0.0
  %v821 = vmax.f32 %v803, 0.0
  %v822 = vmax.f32 %v804, 0.0
  %v823 = vmax.f32 %v805, 0.0
  %v824 = vmax.f32 %v806, 0.0
  %v825 = vmax.f32 %v807, 0.0
  %v826 = vmax.f32 %v808, 0.0
  %v827 = vmax.f32 %v809, 0.0
  %v828 = vmax.f32 %v810, 0.0
  %v829 = vmax.f32 %v811, 0.0
  %v830 = vmax.f32 %v812, 0.0
  %v831 = vmax.f32 %v813, 0.0
  %v832 = vmax.f32 %v814, 0.0
  %vm833 = vcmask 261120
  %834 = vst.msk [vmem:[%s3] sm:$0xff] %vm833, %v815
  %835 = vst.msk [vmem:[%s3 + $0x8] sm:$0xff] %vm833, %v816
  %836 = vst.msk [vmem:[%s3 + $0x10] sm:$0xff] %vm833, %v817
  %837 = vst.msk [vmem:[%s3 + $0x18] sm:$0xff] %vm833, %v818
  %838 = vst.msk [vmem:[%s3 + $0x20] sm:$0xff] %vm833, %v819
  %839 = vst.msk [vmem:[%s3 + $0x28] sm:$0xff] %vm833, %v820
  %840 = vst.msk [vmem:[%s3 + $0x30] sm:$0xff] %vm833, %v821
  %841 = vst.msk [vmem:[%s3 + $0x38] sm:$0xff] %vm833, %v822
  %842 = vst.msk [vmem:[%s3 + $0x40] sm:$0xff] %vm833, %v823
  %843 = vst.msk [vmem:[%s3 + $0x48] sm:$0xff] %vm833, %v824
  %844 = vst.msk [vmem:[%s3 + $0x50] sm:$0xff] %vm833, %v825
  %845 = vst.msk [vmem:[%s3 + $0x58] sm:$0xff] %vm833, %v826
  %846 = vst.msk [vmem:[%s3 + $0x60] sm:$0xff] %vm833, %v827
  %847 = vst.msk [vmem:[%s3 + $0x68] sm:$0xff] %vm833, %v828
  %848 = vst.msk [vmem:[%s3 + $0x70] sm:$0xff] %vm833, %v829
  %849 = vst.msk [vmem:[%s3 + $0x78] sm:$0xff] %vm833, %v830
  %850 = vst.msk [vmem:[%s3 + $0x80] sm:$0xff] %vm833, %v831
  %851 = vst.msk [vmem:[%s3 + $0x88] sm:$0xff] %vm833, %v832
  // Predicated region
  $region14: #{_lambda_.3} parent=0 // pred_check
    _
  $region15: #{_lambda_.3} parent=0 // pred_check_branch
    %853 = sbr.rel (0) target = $region17
  $region16: #{_lambda_.3} parent=0 // pred_region
    _
  $region17: #{_lambda_.3} parent=0 // pred_fallthru
    _
  // Predicated region
  $region18: #{_lambda_.3} parent=0 // pred_check
    _
  $region19: #{_lambda_.3} parent=0 // pred_check_branch
    %855 = sbr.rel (0) target = $region21
  $region20: #{_lambda_.3} parent=0 // pred_region
    _
  $region21: #{_lambda_.3} parent=0 // pred_fallthru
    _

// kernel: _lambda_.4
$region0: #{_lambda_.4}
  #allocation0 [shape = 'u32[]', space=smem, size = 0x4, offset = 0x4, fixed_abs, tag = 'smem constant byte address 0x4 - core index']
  #allocation1 [shape = 'u32[144,128]{1,0:T(1,128)}', space=vmem, size = 0x12000, scoped, tag = 'internal scratch']
  %s0 = inlined_call_operand.vmem [shape: f32[64,800], index: 0, kind: input, shape index: {}]
  %s1 = inlined_call_operand.vmem [shape: f32[800,64], index: 1, kind: input, shape index: {}]
  %s2 = inlined_call_operand.vmem [shape: f32[1,64], index: 2, kind: input, shape index: {}]
  %s3 = inlined_call_operand.vmem [shape: f32[16,64], index: 3, kind: output, shape index: {}]
  %s4 = sld [smem:[#allocation0]]
  $region22: #{_lambda_.4} parent=0
    _
  %s6 = ssub.s32 1, %s4
  %s7 = scalar_select 0, %s6, %s4
  // Predicated region
  $region2: #{_lambda_.4} parent=0 // pred_check
    _
  $region3: #{_lambda_.4} parent=0 // pred_check_branch
    %9 = sbr.rel (0) target = $region5
  $region4: #{_lambda_.4} parent=0 // pred_region
    _
  $region5: #{_lambda_.4} parent=0 // pred_fallthru
    _
  // Predicated region
  $region6: #{_lambda_.4} parent=0 // pred_check
    _
  $region7: #{_lambda_.4} parent=0 // pred_check_branch
    %11 = sbr.rel (0) target = $region9
  $region8: #{_lambda_.4} parent=0 // pred_region
    _
  $region9: #{_lambda_.4} parent=0 // pred_fallthru
    _
  // Predicated region
  $region10: #{_lambda_.4} parent=0 // pred_check
    _
  $region11: #{_lambda_.4} parent=0 // pred_check_branch
    %13 = sbr.rel (0) target = $region13
  $region12: #{_lambda_.4} parent=0 // pred_region
    _
  $region13: #{_lambda_.4} parent=0 // pred_fallthru
    _
  %v14 = vld [vmem:[%s0] sm:$0xff]
  %v15 = vld [vmem:[%s0 + $0x8] sm:$0xff]
  %v16 = vld [vmem:[%s0 + $0x10] sm:$0xff]
  %v17 = vld [vmem:[%s0 + $0x18] sm:$0xff]
  %v18 = vld [vmem:[%s0 + $0x20] sm:$0xff]
  %v19 = vld [vmem:[%s0 + $0x28] sm:$0xff]
  %v20 = vld [vmem:[%s0 + $0x30] sm:$0xff]
  %v21 = vld [vmem:[%s0 + $0x38] sm:$0xff]
  %v22 = vld [vmem:[%s0 + $0x40] sm:$0xff]
  %v23 = vld [vmem:[%s0 + $0x48] sm:$0xff]
  %v24 = vld [vmem:[%s0 + $0x50] sm:$0xff]
  %v25 = vld [vmem:[%s0 + $0x58] sm:$0xff]
  %v26 = vld [vmem:[%s0 + $0x60] sm:$0xff]
  %v27 = vld [vmem:[%s0 + $0x68] sm:$0xff]
  %v28 = vld [vmem:[%s0 + $0x70] sm:$0xff]
  %v29 = vld [vmem:[%s0 + $0x78] sm:$0xff]
  %v30 = vld [vmem:[%s0 + $0x80] sm:$0xff]
  %v31 = vld [vmem:[%s0 + $0x88] sm:$0xff]
  %v32 = vld [vmem:[%s0 + $0x90] sm:$0xff]
  %v33 = vld [vmem:[%s0 + $0x98] sm:$0xff]
  %v34 = vld [vmem:[%s0 + $0xa0] sm:$0xff]
  %v35 = vld [vmem:[%s0 + $0xa8] sm:$0xff]
  %v36 = vld [vmem:[%s0 + $0xb0] sm:$0xff]
  %v37 = vld [vmem:[%s0 + $0xb8] sm:$0xff]
  %v38 = vld [vmem:[%s0 + $0xc0] sm:$0xff]
  %v39 = vld [vmem:[%s0 + $0xc8] sm:$0xff]
  %v40 = vld [vmem:[%s0 + $0xd0] sm:$0xff]
  %v41 = vld [vmem:[%s0 + $0xd8] sm:$0xff]
  %v42 = vld [vmem:[%s0 + $0xe0] sm:$0xff]
  %v43 = vld [vmem:[%s0 + $0xe8] sm:$0xff]
  %v44 = vld [vmem:[%s0 + $0xf0] sm:$0xff]
  %v45 = vld [vmem:[%s0 + $0xf8] sm:$0xff]
  %v46 = vld [vmem:[%s0 + $0x100] sm:$0xff]
  %v47 = vld [vmem:[%s0 + $0x108] sm:$0xff]
  %v48 = vld [vmem:[%s0 + $0x110] sm:$0xff]
  %v49 = vld [vmem:[%s0 + $0x118] sm:$0xff]
  %v50 = vld [vmem:[%s0 + $0x120] sm:$0xff]
  %v51 = vld [vmem:[%s0 + $0x128] sm:$0xff]
  %v52 = vld [vmem:[%s0 + $0x130] sm:$0xff]
  %v53 = vld [vmem:[%s0 + $0x138] sm:$0xff]
  %v54 = vld [vmem:[%s0 + $0x140] sm:$0xff]
  %v55 = vld [vmem:[%s0 + $0x148] sm:$0xff]
  %v56 = vld [vmem:[%s0 + $0x150] sm:$0xff]
  %v57 = vld [vmem:[%s0 + $0x158] sm:$0xff]
  %v58 = vld [vmem:[%s0 + $0x160] sm:$0xff]
  %v59 = vld [vmem:[%s0 + $0x168] sm:$0xff]
  %v60 = vld [vmem:[%s0 + $0x170] sm:$0xff]
  %v61 = vld [vmem:[%s0 + $0x178] sm:$0xff]
  %v62 = vld [vmem:[%s0 + $0x180] sm:$0xff]
  %v63 = vld [vmem:[%s0 + $0x188] sm:$0xff]
  %v64 = vld [vmem:[%s0 + $0x190] sm:$0xff]
  %v65 = vld [vmem:[%s0 + $0x198] sm:$0xff]
  %v66 = vld [vmem:[%s0 + $0x1a0] sm:$0xff]
  %v67 = vld [vmem:[%s0 + $0x1a8] sm:$0xff]
  %v68 = vld [vmem:[%s0 + $0x1b0] sm:$0xff]
  %v69 = vld [vmem:[%s0 + $0x1b8] sm:$0xff]
  %v70 = vld [vmem:[%s1] sm:$0xff]
  %v71 = vld [vmem:[%s1 + $0x8] sm:$0xff]
  %v72 = vld [vmem:[%s1 + $0x10] sm:$0xff]
  %v73 = vld [vmem:[%s1 + $0x18] sm:$0xff]
  %v74 = vld [vmem:[%s1 + $0x20] sm:$0xff]
  %v75 = vld [vmem:[%s1 + $0x28] sm:$0xff]
  %v76 = vld [vmem:[%s1 + $0x30] sm:$0xff]
  %v77 = vld [vmem:[%s1 + $0x38] sm:$0xff]
  %v78 = vld [vmem:[%s1 + $0x40] sm:$0xff]
  %v79 = vld [vmem:[%s1 + $0x48] sm:$0xff]
  %v80 = vld [vmem:[%s1 + $0x50] sm:$0xff]
  %v81 = vld [vmem:[%s1 + $0x58] sm:$0xff]
  %v82 = vld [vmem:[%s1 + $0x60] sm:$0xff]
  %v83 = vld [vmem:[%s1 + $0x68] sm:$0xff]
  %v84 = vld [vmem:[%s1 + $0x70] sm:$0xff]
  %v85 = vld [vmem:[%s1 + $0x78] sm:$0xff]
  %v86 = vld [vmem:[%s1 + $0x80] sm:$0xff]
  %v87 = vld [vmem:[%s1 + $0x88] sm:$0xff]
  %v88 = vld [vmem:[%s1 + $0x90] sm:$0xff]
  %v89 = vld [vmem:[%s1 + $0x98] sm:$0xff]
  %v90 = vld [vmem:[%s1 + $0xa0] sm:$0xff]
  %v91 = vld [vmem:[%s1 + $0xa8] sm:$0xff]
  %v92 = vld [vmem:[%s1 + $0xb0] sm:$0xff]
  %v93 = vld [vmem:[%s1 + $0xb8] sm:$0xff]
  %v94 = vld [vmem:[%s1 + $0xc0] sm:$0xff]
  %v95 = vld [vmem:[%s1 + $0xc8] sm:$0xff]
  %v96 = vld [vmem:[%s1 + $0xd0] sm:$0xff]
  %v97 = vld [vmem:[%s1 + $0xd8] sm:$0xff]
  %v98 = vld [vmem:[%s1 + $0xe0] sm:$0xff]
  %v99 = vld [vmem:[%s1 + $0xe8] sm:$0xff]
  %v100 = vld [vmem:[%s1 + $0xf0] sm:$0xff]
  %v101 = vld [vmem:[%s1 + $0xf8] sm:$0xff]
  %v102 = vld [vmem:[%s1 + $0x100] sm:$0xff]
  %v103 = vld [vmem:[%s1 + $0x108] sm:$0xff]
  %v104 = vld [vmem:[%s1 + $0x110] sm:$0xff]
  %v105 = vld [vmem:[%s1 + $0x118] sm:$0xff]
  %v106 = vld [vmem:[%s1 + $0x120] sm:$0xff]
  %v107 = vld [vmem:[%s1 + $0x128] sm:$0xff]
  %v108 = vld [vmem:[%s1 + $0x130] sm:$0xff]
  %v109 = vld [vmem:[%s1 + $0x138] sm:$0xff]
  %v110 = vld [vmem:[%s1 + $0x140] sm:$0xff]
  %v111 = vld [vmem:[%s1 + $0x148] sm:$0xff]
  %v112 = vld [vmem:[%s1 + $0x150] sm:$0xff]
  %v113 = vld [vmem:[%s1 + $0x158] sm:$0xff]
  %v114 = vld [vmem:[%s1 + $0x160] sm:$0xff]
  %v115 = vld [vmem:[%s1 + $0x168] sm:$0xff]
  %v116 = vld [vmem:[%s1 + $0x170] sm:$0xff]
  %v117 = vld [vmem:[%s1 + $0x178] sm:$0xff]
  %v118 = vld [vmem:[%s1 + $0x180] sm:$0xff]
  %v119 = vld [vmem:[%s1 + $0x188] sm:$0xff]
  %v120 = vld [vmem:[%s1 + $0x190] sm:$0xff]
  %v121 = vld [vmem:[%s1 + $0x198] sm:$0xff]
  %v122 = vld [vmem:[%s1 + $0x1a0] sm:$0xff]
  %v123 = vld [vmem:[%s1 + $0x1a8] sm:$0xff]
  %v124 = vld [vmem:[%s1 + $0x1b0] sm:$0xff]
  %v125 = vld [vmem:[%s1 + $0x1b8] sm:$0xff]
  %v126 = vld [vmem:[%s1 + $0x1c0] sm:$0xff]
  %v127 = vld [vmem:[%s1 + $0x1c8] sm:$0xff]
  %v128 = vld [vmem:[%s1 + $0x1d0] sm:$0xff]
  %v129 = vld [vmem:[%s1 + $0x1d8] sm:$0xff]
  %v130 = vld [vmem:[%s1 + $0x1e0] sm:$0xff]
  %v131 = vld [vmem:[%s1 + $0x1e8] sm:$0xff]
  %v132 = vld [vmem:[%s1 + $0x1f0] sm:$0xff]
  %v133 = vld [vmem:[%s1 + $0x1f8] sm:$0xff]
  %v134 = vld [vmem:[%s1 + $0x200] sm:$0xff]
  %v135 = vld [vmem:[%s1 + $0x208] sm:$0xff]
  %v136 = vld [vmem:[%s1 + $0x210] sm:$0xff]
  %v137 = vld [vmem:[%s1 + $0x218] sm:$0xff]
  %v138 = vld [vmem:[%s1 + $0x220] sm:$0xff]
  %v139 = vld [vmem:[%s1 + $0x228] sm:$0xff]
  %v140 = vld [vmem:[%s1 + $0x230] sm:$0xff]
  %v141 = vld [vmem:[%s1 + $0x238] sm:$0xff]
  %v142 = vld [vmem:[%s1 + $0x240] sm:$0xff]
  %v143 = vld [vmem:[%s1 + $0x248] sm:$0xff]
  %v144 = vld [vmem:[%s1 + $0x250] sm:$0xff]
  %v145 = vld [vmem:[%s1 + $0x258] sm:$0xff]
  %v146 = vld [vmem:[%s1 + $0x260] sm:$0xff]
  %v147 = vld [vmem:[%s1 + $0x268] sm:$0xff]
  %v148 = vld [vmem:[%s1 + $0x270] sm:$0xff]
  %v149 = vld [vmem:[%s1 + $0x278] sm:$0xff]
  %v150 = vld [vmem:[%s1 + $0x280] sm:$0xff]
  %v151 = vld [vmem:[%s1 + $0x288] sm:$0xff]
  %v152 = vld [vmem:[%s1 + $0x290] sm:$0xff]
  %v153 = vld [vmem:[%s1 + $0x298] sm:$0xff]
  %v154 = vld [vmem:[%s1 + $0x2a0] sm:$0xff]
  %v155 = vld [vmem:[%s1 + $0x2a8] sm:$0xff]
  %v156 = vld [vmem:[%s1 + $0x2b0] sm:$0xff]
  %v157 = vld [vmem:[%s1 + $0x2b8] sm:$0xff]
  %v158 = vld [vmem:[%s1 + $0x2c0] sm:$0xff]
  %v159 = vld [vmem:[%s1 + $0x2c8] sm:$0xff]
  %v160 = vld [vmem:[%s1 + $0x2d0] sm:$0xff]
  %v161 = vld [vmem:[%s1 + $0x2d8] sm:$0xff]
  %v162 = vld [vmem:[%s1 + $0x2e0] sm:$0xff]
  %v163 = vld [vmem:[%s1 + $0x2e8] sm:$0xff]
  %v164 = vld [vmem:[%s1 + $0x2f0] sm:$0xff]
  %v165 = vld [vmem:[%s1 + $0x2f8] sm:$0xff]
  %v166 = vld [vmem:[%s1 + $0x300] sm:$0xff]
  %v167 = vld [vmem:[%s1 + $0x308] sm:$0xff]
  %v168 = vld [vmem:[%s1 + $0x310] sm:$0xff]
  %v169 = vld [vmem:[%s1 + $0x318] sm:$0xff]
  %vm170 = vcmask 261120
  %v172 = vsel %vm170, %v20, 0
  %v175 = vsel %vm170, %v27, 0
  %v178 = vsel %vm170, %v34, 0
  %v181 = vsel %vm170, %v41, 0
  %v184 = vsel %vm170, %v48, 0
  %v187 = vsel %vm170, %v55, 0
  %v190 = vsel %vm170, %v62, 0
  %v193 = vsel %vm170, %v69, 0
  %195 = vmatprep.subr.mxu0 0.0
  %196 = vmatpush1.msra.mxu0 %v85
  %197 = vmatprep.subr.mxu0 0.0
  %198 = vmatpush1.msra.mxu0 %v84
  %199 = vmatprep.subr.mxu0 0.0
  %200 = vmatpush1.msra.mxu0 %v83
  %201 = vmatprep.subr.mxu0 0.0
  %202 = vmatpush1.msra.mxu0 %v82
  %203 = vmatprep.subr.mxu0 0.0
  %204 = vmatpush1.msra.mxu0 %v81
  %205 = vmatprep.subr.mxu0 0.0
  %206 = vmatpush1.msra.mxu0 %v80
  %207 = vmatprep.subr.mxu0 0.0
  %208 = vmatpush1.msra.mxu0 %v79
  %209 = vmatprep.subr.mxu0 0.0
  %210 = vmatpush1.msra.mxu0 %v78
  %211 = vmatprep.subr.mxu0 0.0
  %212 = vmatpush1.msra.mxu0 %v77
  %213 = vmatprep.subr.mxu0 0.0
  %214 = vmatpush1.msra.mxu0 %v76
  %215 = vmatprep.subr.mxu0 0.0
  %216 = vmatpush1.msra.mxu0 %v75
  %217 = vmatprep.subr.mxu0 0.0
  %218 = vmatpush1.msra.mxu0 %v74
  %219 = vmatprep.subr.mxu0 0.0
  %220 = vmatpush1.msra.mxu0 %v73
  %221 = vmatprep.subr.mxu0 0.0
  %222 = vmatpush1.msra.mxu0 %v72
  %223 = vmatprep.subr.mxu0 0.0
  %224 = vmatpush1.msra.mxu0 %v71
  %225 = vmatprep.subr.mxu0 0.0
  %226 = vmatpush1.msra.mxu0 %v70
  %227 = vmatprep.subr.mxu0 0.0
  %228 = vmatpush2.msra.mxu0 %v101
  %229 = vmatprep.subr.mxu0 0.0
  %230 = vmatpush2.msra.mxu0 %v100
  %231 = vmatprep.subr.mxu0 0.0
  %232 = vmatpush2.msra.mxu0 %v99
  %233 = vmatprep.subr.mxu0 0.0
  %234 = vmatpush2.msra.mxu0 %v98
  %235 = vmatprep.subr.mxu0 0.0
  %236 = vmatpush2.msra.mxu0 %v97
  %237 = vmatprep.subr.mxu0 0.0
  %238 = vmatpush2.msra.mxu0 %v96
  %239 = vmatprep.subr.mxu0 0.0
  %240 = vmatpush2.msra.mxu0 %v95
  %241 = vmatprep.subr.mxu0 0.0
  %242 = vmatpush2.msra.mxu0 %v94
  %243 = vmatprep.subr.mxu0 0.0
  %244 = vmatpush2.msra.mxu0 %v93
  %245 = vmatprep.subr.mxu0 0.0
  %246 = vmatpush2.msra.mxu0 %v92
  %247 = vmatprep.subr.mxu0 0.0
  %248 = vmatpush2.msra.mxu0 %v91
  %249 = vmatprep.subr.mxu0 0.0
  %250 = vmatpush2.msra.mxu0 %v90
  %251 = vmatprep.subr.mxu0 0.0
  %252 = vmatpush2.msra.mxu0 %v89
  %253 = vmatprep.subr.mxu0 0.0
  %254 = vmatpush2.msra.mxu0 %v88
  %255 = vmatprep.subr.mxu0 0.0
  %256 = vmatpush2.msra.mxu0 %v87
  %257 = vmatprep.subr.mxu0 0.0
  %258 = vmatpush2.msra.mxu0 %v86
  %259 = vmatprep.mubr.f32.mxu0 %v15
  %260 = vmatmul.mubr.f32.gmra.mxu0 %v14
  %v261 = vpop.f32.mrf.mxu0
  %v262 = vadd.f32 0.0, %v261
  %v263 = vpop.f32.mrf.mxu0
  %264 = vmatprep.mubr.f32.mxu0 %v22
  %265 = vmatmul.mubr.f32.gmra.mxu0 %v21
  %v266 = vpop.f32.mrf.mxu0
  %v267 = vadd.f32 0.0, %v266
  %v268 = vpop.f32.mrf.mxu0
  %269 = vmatprep.mubr.f32.mxu0 %v29
  %270 = vmatmul.mubr.f32.gmra.mxu0 %v28
  %v271 = vpop.f32.mrf.mxu0
  %v272 = vadd.f32 0.0, %v271
  %v273 = vpop.f32.mrf.mxu0
  %274 = vmatprep.mubr.f32.mxu0 %v36
  %275 = vmatmul.mubr.f32.gmra.mxu0 %v35
  %v276 = vpop.f32.mrf.mxu0
  %v277 = vadd.f32 0.0, %v276
  %v278 = vpop.f32.mrf.mxu0
  %279 = vmatprep.mubr.f32.mxu0 %v43
  %280 = vmatmul.mubr.f32.gmra.mxu0 %v42
  %v281 = vpop.f32.mrf.mxu0
  %v282 = vadd.f32 0.0, %v281
  %v283 = vpop.f32.mrf.mxu0
  %284 = vmatprep.mubr.f32.mxu0 %v50
  %285 = vmatmul.mubr.f32.gmra.mxu0 %v49
  %v286 = vpop.f32.mrf.mxu0
  %v287 = vadd.f32 0.0, %v286
  %v288 = vpop.f32.mrf.mxu0
  %289 = vmatprep.mubr.f32.mxu0 %v57
  %290 = vmatmul.mubr.f32.gmra.mxu0 %v56
  %v291 = vpop.f32.mrf.mxu0
  %v292 = vadd.f32 0.0, %v291
  %v293 = vpop.f32.mrf.mxu0
  %294 = vmatprep.mubr.f32.mxu0 %v64
  %295 = vmatmul.mubr.f32.gmra.mxu0 %v63
  %v296 = vpop.f32.mrf.mxu0
  %v297 = vadd.f32 0.0, %v296
  %v298 = vpop.f32.mrf.mxu0
  %299 = vdwg.mxu0
  %300 = vmatprep.subr.mxu0 0.0
  %301 = vmatpush1.msra.mxu0 %v117
  %302 = vmatprep.subr.mxu0 0.0
  %303 = vmatpush1.msra.mxu0 %v116
  %304 = vmatprep.subr.mxu0 0.0
  %305 = vmatpush1.msra.mxu0 %v115
  %306 = vmatprep.subr.mxu0 0.0
  %307 = vmatpush1.msra.mxu0 %v114
  %308 = vmatprep.subr.mxu0 0.0
  %309 = vmatpush1.msra.mxu0 %v113
  %310 = vmatprep.subr.mxu0 0.0
  %311 = vmatpush1.msra.mxu0 %v112
  %312 = vmatprep.subr.mxu0 0.0
  %313 = vmatpush1.msra.mxu0 %v111
  %314 = vmatprep.subr.mxu0 0.0
  %315 = vmatpush1.msra.mxu0 %v110
  %316 = vmatprep.subr.mxu0 0.0
  %317 = vmatpush1.msra.mxu0 %v109
  %318 = vmatprep.subr.mxu0 0.0
  %319 = vmatpush1.msra.mxu0 %v108
  %320 = vmatprep.subr.mxu0 0.0
  %321 = vmatpush1.msra.mxu0 %v107
  %322 = vmatprep.subr.mxu0 0.0
  %323 = vmatpush1.msra.mxu0 %v106
  %324 = vmatprep.subr.mxu0 0.0
  %325 = vmatpush1.msra.mxu0 %v105
  %326 = vmatprep.subr.mxu0 0.0
  %327 = vmatpush1.msra.mxu0 %v104
  %328 = vmatprep.subr.mxu0 0.0
  %329 = vmatpush1.msra.mxu0 %v103
  %330 = vmatprep.subr.mxu0 0.0
  %331 = vmatpush1.msra.mxu0 %v102
  %332 = vmatprep.subr.mxu0 0.0
  %333 = vmatpush2.msra.mxu0 %v133
  %334 = vmatprep.subr.mxu0 0.0
  %335 = vmatpush2.msra.mxu0 %v132
  %336 = vmatprep.subr.mxu0 0.0
  %337 = vmatpush2.msra.mxu0 %v131
  %338 = vmatprep.subr.mxu0 0.0
  %339 = vmatpush2.msra.mxu0 %v130
  %340 = vmatprep.subr.mxu0 0.0
  %341 = vmatpush2.msra.mxu0 %v129
  %342 = vmatprep.subr.mxu0 0.0
  %343 = vmatpush2.msra.mxu0 %v128
  %344 = vmatprep.subr.mxu0 0.0
  %345 = vmatpush2.msra.mxu0 %v127
  %346 = vmatprep.subr.mxu0 0.0
  %347 = vmatpush2.msra.mxu0 %v126
  %348 = vmatprep.subr.mxu0 0.0
  %349 = vmatpush2.msra.mxu0 %v125
  %350 = vmatprep.subr.mxu0 0.0
  %351 = vmatpush2.msra.mxu0 %v124
  %352 = vmatprep.subr.mxu0 0.0
  %353 = vmatpush2.msra.mxu0 %v123
  %354 = vmatprep.subr.mxu0 0.0
  %355 = vmatpush2.msra.mxu0 %v122
  %356 = vmatprep.subr.mxu0 0.0
  %357 = vmatpush2.msra.mxu0 %v121
  %358 = vmatprep.subr.mxu0 0.0
  %359 = vmatpush2.msra.mxu0 %v120
  %360 = vmatprep.subr.mxu0 0.0
  %361 = vmatpush2.msra.mxu0 %v119
  %362 = vmatprep.subr.mxu0 0.0
  %363 = vmatpush2.msra.mxu0 %v118
  %364 = vmatprep.mubr.f32.mxu0 %v17
  %365 = vmatmul.mubr.f32.gmra.mxu0 %v16
  %v366 = vpop.f32.mrf.mxu0
  %v367 = vadd.f32 %v262, %v366
  %v368 = vpop.f32.mrf.mxu0
  %369 = vmatprep.mubr.f32.mxu0 %v24
  %370 = vmatmul.mubr.f32.gmra.mxu0 %v23
  %v371 = vpop.f32.mrf.mxu0
  %v372 = vadd.f32 %v267, %v371
  %v373 = vpop.f32.mrf.mxu0
  %374 = vmatprep.mubr.f32.mxu0 %v31
  %375 = vmatmul.mubr.f32.gmra.mxu0 %v30
  %v376 = vpop.f32.mrf.mxu0
  %v377 = vadd.f32 %v272, %v376
  %v378 = vpop.f32.mrf.mxu0
  %379 = vmatprep.mubr.f32.mxu0 %v38
  %380 = vmatmul.mubr.f32.gmra.mxu0 %v37
  %v381 = vpop.f32.mrf.mxu0
  %v382 = vadd.f32 %v277, %v381
  %v383 = vpop.f32.mrf.mxu0
  %384 = vmatprep.mubr.f32.mxu0 %v45
  %385 = vmatmul.mubr.f32.gmra.mxu0 %v44
  %v386 = vpop.f32.mrf.mxu0
  %v387 = vadd.f32 %v282, %v386
  %v388 = vpop.f32.mrf.mxu0
  %389 = vmatprep.mubr.f32.mxu0 %v52
  %390 = vmatmul.mubr.f32.gmra.mxu0 %v51
  %v391 = vpop.f32.mrf.mxu0
  %v392 = vadd.f32 %v287, %v391
  %v393 = vpop.f32.mrf.mxu0
  %394 = vmatprep.mubr.f32.mxu0 %v59
  %395 = vmatmul.mubr.f32.gmra.mxu0 %v58
  %v396 = vpop.f32.mrf.mxu0
  %v397 = vadd.f32 %v292, %v396
  %v398 = vpop.f32.mrf.mxu0
  %399 = vmatprep.mubr.f32.mxu0 %v66
  %400 = vmatmul.mubr.f32.gmra.mxu0 %v65
  %v401 = vpop.f32.mrf.mxu0
  %v402 = vadd.f32 %v297, %v401
  %v403 = vpop.f32.mrf.mxu0
  %404 = vdwg.mxu0
  %405 = vmatprep.subr.mxu0 0.0
  %406 = vmatpush1.msra.mxu0 %v149
  %407 = vmatprep.subr.mxu0 0.0
  %408 = vmatpush1.msra.mxu0 %v148
  %409 = vmatprep.subr.mxu0 0.0
  %410 = vmatpush1.msra.mxu0 %v147
  %411 = vmatprep.subr.mxu0 0.0
  %412 = vmatpush1.msra.mxu0 %v146
  %413 = vmatprep.subr.mxu0 0.0
  %414 = vmatpush1.msra.mxu0 %v145
  %415 = vmatprep.subr.mxu0 0.0
  %416 = vmatpush1.msra.mxu0 %v144
  %417 = vmatprep.subr.mxu0 0.0
  %418 = vmatpush1.msra.mxu0 %v143
  %419 = vmatprep.subr.mxu0 0.0
  %420 = vmatpush1.msra.mxu0 %v142
  %421 = vmatprep.subr.mxu0 0.0
  %422 = vmatpush1.msra.mxu0 %v141
  %423 = vmatprep.subr.mxu0 0.0
  %424 = vmatpush1.msra.mxu0 %v140
  %425 = vmatprep.subr.mxu0 0.0
  %426 = vmatpush1.msra.mxu0 %v139
  %427 = vmatprep.subr.mxu0 0.0
  %428 = vmatpush1.msra.mxu0 %v138
  %429 = vmatprep.subr.mxu0 0.0
  %430 = vmatpush1.msra.mxu0 %v137
  %431 = vmatprep.subr.mxu0 0.0
  %432 = vmatpush1.msra.mxu0 %v136
  %433 = vmatprep.subr.mxu0 0.0
  %434 = vmatpush1.msra.mxu0 %v135
  %435 = vmatprep.subr.mxu0 0.0
  %436 = vmatpush1.msra.mxu0 %v134
  %437 = vmatprep.subr.mxu0 0.0
  %438 = vmatpush2.msra.mxu0 %v165
  %439 = vmatprep.subr.mxu0 0.0
  %440 = vmatpush2.msra.mxu0 %v164
  %441 = vmatprep.subr.mxu0 0.0
  %442 = vmatpush2.msra.mxu0 %v163
  %443 = vmatprep.subr.mxu0 0.0
  %444 = vmatpush2.msra.mxu0 %v162
  %445 = vmatprep.subr.mxu0 0.0
  %446 = vmatpush2.msra.mxu0 %v161
  %447 = vmatprep.subr.mxu0 0.0
  %448 = vmatpush2.msra.mxu0 %v160
  %449 = vmatprep.subr.mxu0 0.0
  %450 = vmatpush2.msra.mxu0 %v159
  %451 = vmatprep.subr.mxu0 0.0
  %452 = vmatpush2.msra.mxu0 %v158
  %453 = vmatprep.subr.mxu0 0.0
  %454 = vmatpush2.msra.mxu0 %v157
  %455 = vmatprep.subr.mxu0 0.0
  %456 = vmatpush2.msra.mxu0 %v156
  %457 = vmatprep.subr.mxu0 0.0
  %458 = vmatpush2.msra.mxu0 %v155
  %459 = vmatprep.subr.mxu0 0.0
  %460 = vmatpush2.msra.mxu0 %v154
  %461 = vmatprep.subr.mxu0 0.0
  %462 = vmatpush2.msra.mxu0 %v153
  %463 = vmatprep.subr.mxu0 0.0
  %464 = vmatpush2.msra.mxu0 %v152
  %465 = vmatprep.subr.mxu0 0.0
  %466 = vmatpush2.msra.mxu0 %v151
  %467 = vmatprep.subr.mxu0 0.0
  %468 = vmatpush2.msra.mxu0 %v150
  %469 = vmatprep.mubr.f32.mxu0 %v19
  %470 = vmatmul.mubr.f32.gmra.mxu0 %v18
  %v471 = vpop.f32.mrf.mxu0
  %v472 = vadd.f32 %v367, %v471
  %v473 = vpop.f32.mrf.mxu0
  %474 = vmatprep.mubr.f32.mxu0 %v26
  %475 = vmatmul.mubr.f32.gmra.mxu0 %v25
  %v476 = vpop.f32.mrf.mxu0
  %v477 = vadd.f32 %v372, %v476
  %v478 = vpop.f32.mrf.mxu0
  %479 = vmatprep.mubr.f32.mxu0 %v33
  %480 = vmatmul.mubr.f32.gmra.mxu0 %v32
  %v481 = vpop.f32.mrf.mxu0
  %v482 = vadd.f32 %v377, %v481
  %v483 = vpop.f32.mrf.mxu0
  %484 = vmatprep.mubr.f32.mxu0 %v40
  %485 = vmatmul.mubr.f32.gmra.mxu0 %v39
  %v486 = vpop.f32.mrf.mxu0
  %v487 = vadd.f32 %v382, %v486
  %v488 = vpop.f32.mrf.mxu0
  %489 = vmatprep.mubr.f32.mxu0 %v47
  %490 = vmatmul.mubr.f32.gmra.mxu0 %v46
  %v491 = vpop.f32.mrf.mxu0
  %v492 = vadd.f32 %v387, %v491
  %v493 = vpop.f32.mrf.mxu0
  %494 = vmatprep.mubr.f32.mxu0 %v54
  %495 = vmatmul.mubr.f32.gmra.mxu0 %v53
  %v496 = vpop.f32.mrf.mxu0
  %v497 = vadd.f32 %v392, %v496
  %v498 = vpop.f32.mrf.mxu0
  %499 = vmatprep.mubr.f32.mxu0 %v61
  %500 = vmatmul.mubr.f32.gmra.mxu0 %v60
  %v501 = vpop.f32.mrf.mxu0
  %v502 = vadd.f32 %v397, %v501
  %v503 = vpop.f32.mrf.mxu0
  %504 = vmatprep.mubr.f32.mxu0 %v68
  %505 = vmatmul.mubr.f32.gmra.mxu0 %v67
  %v506 = vpop.f32.mrf.mxu0
  %v507 = vadd.f32 %v402, %v506
  %v508 = vpop.f32.mrf.mxu0
  %509 = vdwg.mxu0
  %510 = vmatprep.subr.mxu0 0.0
  %511 = vmatpush1.msra.mxu0 0.0
  %512 = vmatprep.subr.mxu0 0.0
  %513 = vmatpush1.msra.mxu0 0.0
  %514 = vmatprep.subr.mxu0 0.0
  %515 = vmatpush1.msra.mxu0 0.0
  %516 = vmatprep.subr.mxu0 0.0
  %517 = vmatpush1.msra.mxu0 0.0
  %518 = vmatprep.subr.mxu0 0.0
  %519 = vmatpush1.msra.mxu0 0.0
  %520 = vmatprep.subr.mxu0 0.0
  %521 = vmatpush1.msra.mxu0 0.0
  %522 = vmatprep.subr.mxu0 0.0
  %523 = vmatpush1.msra.mxu0 0.0
  %524 = vmatprep.subr.mxu0 0.0
  %525 = vmatpush1.msra.mxu0 0.0
  %526 = vmatprep.subr.mxu0 0.0
  %527 = vmatpush1.msra.mxu0 0.0
  %528 = vmatprep.subr.mxu0 0.0
  %529 = vmatpush1.msra.mxu0 0.0
  %530 = vmatprep.subr.mxu0 0.0
  %531 = vmatpush1.msra.mxu0 0.0
  %532 = vmatprep.subr.mxu0 0.0
  %533 = vmatpush1.msra.mxu0 0.0
  %534 = vmatprep.subr.mxu0 0.0
  %535 = vmatpush1.msra.mxu0 %v169
  %536 = vmatprep.subr.mxu0 0.0
  %537 = vmatpush1.msra.mxu0 %v168
  %538 = vmatprep.subr.mxu0 0.0
  %539 = vmatpush1.msra.mxu0 %v167
  %540 = vmatprep.subr.mxu0 0.0
  %541 = vmatpush1.msra.mxu0 %v166
  %542 = vmatprep.subr.mxu0 0.0
  %543 = vmatpush2.msra.mxu0 0.0
  %544 = vmatprep.subr.mxu0 0.0
  %545 = vmatpush2.msra.mxu0 0.0
  %546 = vmatprep.subr.mxu0 0.0
  %547 = vmatpush2.msra.mxu0 0.0
  %548 = vmatprep.subr.mxu0 0.0
  %549 = vmatpush2.msra.mxu0 0.0
  %550 = vmatprep.subr.mxu0 0.0
  %551 = vmatpush2.msra.mxu0 0.0
  %552 = vmatprep.subr.mxu0 0.0
  %553 = vmatpush2.msra.mxu0 0.0
  %554 = vmatprep.subr.mxu0 0.0
  %555 = vmatpush2.msra.mxu0 0.0
  %556 = vmatprep.subr.mxu0 0.0
  %557 = vmatpush2.msra.mxu0 0.0
  %558 = vmatprep.subr.mxu0 0.0
  %559 = vmatpush2.msra.mxu0 0.0
  %560 = vmatprep.subr.mxu0 0.0
  %561 = vmatpush2.msra.mxu0 0.0
  %562 = vmatprep.subr.mxu0 0.0
  %563 = vmatpush2.msra.mxu0 0.0
  %564 = vmatprep.subr.mxu0 0.0
  %565 = vmatpush2.msra.mxu0 0.0
  %566 = vmatprep.subr.mxu0 0.0
  %567 = vmatpush2.msra.mxu0 0.0
  %568 = vmatprep.subr.mxu0 0.0
  %569 = vmatpush2.msra.mxu0 0.0
  %570 = vmatprep.subr.mxu0 0.0
  %571 = vmatpush2.msra.mxu0 0.0
  %572 = vmatprep.subr.mxu0 0.0
  %573 = vmatpush2.msra.mxu0 0.0
  %574 = vmatprep.mubr.f32.mxu0 0.0
  %575 = vmatmul.mubr.f32.gmra.mxu0 %v172
  %v576 = vpop.f32.mrf.mxu0
  %v577 = vadd.f32 %v472, %v576
  %v578 = vpop.f32.mrf.mxu0
  %579 = vmatprep.mubr.f32.mxu0 0.0
  %580 = vmatmul.mubr.f32.gmra.mxu0 %v175
  %v581 = vpop.f32.mrf.mxu0
  %v582 = vadd.f32 %v477, %v581
  %v583 = vpop.f32.mrf.mxu0
  %584 = vmatprep.mubr.f32.mxu0 0.0
  %585 = vmatmul.mubr.f32.gmra.mxu0 %v178
  %v586 = vpop.f32.mrf.mxu0
  %v587 = vadd.f32 %v482, %v586
  %v588 = vpop.f32.mrf.mxu0
  %589 = vmatprep.mubr.f32.mxu0 0.0
  %590 = vmatmul.mubr.f32.gmra.mxu0 %v181
  %v591 = vpop.f32.mrf.mxu0
  %v592 = vadd.f32 %v487, %v591
  %v593 = vpop.f32.mrf.mxu0
  %594 = vmatprep.mubr.f32.mxu0 0.0
  %595 = vmatmul.mubr.f32.gmra.mxu0 %v184
  %v596 = vpop.f32.mrf.mxu0
  %v597 = vadd.f32 %v492, %v596
  %v598 = vpop.f32.mrf.mxu0
  %599 = vmatprep.mubr.f32.mxu0 0.0
  %600 = vmatmul.mubr.f32.gmra.mxu0 %v187
  %v601 = vpop.f32.mrf.mxu0
  %v602 = vadd.f32 %v497, %v601
  %v603 = vpop.f32.mrf.mxu0
  %604 = vmatprep.mubr.f32.mxu0 0.0
  %605 = vmatmul.mubr.f32.gmra.mxu0 %v190
  %v606 = vpop.f32.mrf.mxu0
  %v607 = vadd.f32 %v502, %v606
  %v608 = vpop.f32.mrf.mxu0
  %609 = vmatprep.mubr.f32.mxu0 0.0
  %610 = vmatmul.mubr.f32.gmra.mxu0 %v193
  %v611 = vpop.f32.mrf.mxu0
  %v612 = vadd.f32 %v507, %v611
  %v613 = vpop.f32.mrf.mxu0
  %614 = vdwg.mxu0
  %v615 = vmax.f32 %v577, %v587
  %v616 = vmax.f32 %v582, %v592
  %v617 = vmax.f32 %v597, %v607
  %v618 = vmax.f32 %v602, %v612
  %v619 = vmax.f32 %v615, %v617
  %v620 = vmax.f32 %v616, %v618
  %v621 = vld [vmem:[%s2] sm:$0x1]
  %v623 = vlaneseq
  %v624 = vshrl.u32 %v623, 7
  %v625 = vsub.s32 0, %v624
  %v626 = vrot.slane %v621, %v625
  %v628 = vadd.f32 %v619, %v626
  %v629 = vadd.f32 %v620, %v626
  %v630 = vmax.f32 %v628, 0.0
  %v631 = vmax.f32 %v629, 0.0
  %vm632 = vcmask 523264
  %633 = vst.msk [vmem:[%s3] sm:$0xff] %vm632, %v630
  %634 = vst.msk [vmem:[%s3 + $0x8] sm:$0xff] %vm632, %v631
  // Predicated region
  $region14: #{_lambda_.4} parent=0 // pred_check
    _
  $region15: #{_lambda_.4} parent=0 // pred_check_branch
    %636 = sbr.rel (0) target = $region17
  $region16: #{_lambda_.4} parent=0 // pred_region
    _
  $region17: #{_lambda_.4} parent=0 // pred_fallthru
    _
  // Predicated region
  $region18: #{_lambda_.4} parent=0 // pred_check
    _
  $region19: #{_lambda_.4} parent=0 // pred_check_branch
    %638 = sbr.rel (0) target = $region21
  $region20: #{_lambda_.4} parent=0 // pred_region
    _
  $region21: #{_lambda_.4} parent=0 // pred_fallthru
    _

// kernel: _lambda_.5
$region0: #{_lambda_.5}
  #allocation0 [shape = 'u32[]', space=smem, size = 0x4, offset = 0x4, fixed_abs, tag = 'smem constant byte address 0x4 - core index']
  #allocation1 [shape = 'u32[144,128]{1,0:T(1,128)}', space=vmem, size = 0x12000, scoped, tag = 'internal scratch']
  %s0 = inlined_call_operand.vmem [shape: f32[4,256], index: 0, kind: input, shape index: {}]
  %s1 = inlined_call_operand.vmem [shape: f32[256,64], index: 1, kind: input, shape index: {}]
  %s2 = inlined_call_operand.vmem [shape: f32[1,64], index: 2, kind: input, shape index: {}]
  %s3 = inlined_call_operand.vmem [shape: f32[64,10], index: 3, kind: input, shape index: {}]
  %s4 = inlined_call_operand.vmem [shape: f32[1,10], index: 4, kind: input, shape index: {}]
  %s5 = inlined_call_operand.vmem [shape: f32[10,2], index: 5, kind: input, shape index: {}]
  %s6 = inlined_call_operand.vmem [shape: f32[10,2], index: 6, kind: input, shape index: {}]
  %s7 = inlined_call_operand.vmem [shape: f32[1,2], index: 7, kind: input, shape index: {}]
  %s8 = inlined_call_operand.vmem [shape: f32[4,10], index: 8, kind: output, shape index: {0}]
  %s9 = inlined_call_operand.hbm [shape: f32[2,2], index: 9, kind: output, shape index: {1}]
  %10 = xla_tuple %s8, %s9
  %s11 = sld [smem:[#allocation0]]
  $region50: #{_lambda_.5} parent=0
    _
  %s13 = ssub.s32 1, %s11
  %s14 = scalar_select 0, %s13, %s11
  $region1: #{_lambda_.5} parent=0
    #allocation2 [shape = 'u8[1024]{0}', space=vmem, size = 0x400, scoped, tag = 'output window, operand 1, single buffered']
    #allocation3 [shape = 's32[1]{0}', space=sflag, size = 0x4, scoped, tag = 'scoped memory for _lambda_.5']
    %15 = vsyncpa [#allocation3], 0
    // Predicated region
    $region2: #{_lambda_.5} parent=1 // pred_check
      _
    $region3: #{_lambda_.5} parent=1 // pred_check_branch
      %17 = sbr.rel (0) target = $region5
    $region4: #{_lambda_.5} parent=1 // pred_region
      _
    $region5: #{_lambda_.5} parent=1 // pred_fallthru
      _
    // Predicated region
    $region6: #{_lambda_.5} parent=1 // pred_check
      _
    $region7: #{_lambda_.5} parent=1 // pred_check_branch
      %19 = sbr.rel (0) target = $region9
    $region8: #{_lambda_.5} parent=1 // pred_region
      _
    $region9: #{_lambda_.5} parent=1 // pred_fallthru
      _
    // Predicated region
    $region10: #{_lambda_.5} parent=1 // pred_check
      _
    $region11: #{_lambda_.5} parent=1 // pred_check_branch
      %21 = sbr.rel (0) target = $region13
    $region12: #{_lambda_.5} parent=1 // pred_region
      _
    $region13: #{_lambda_.5} parent=1 // pred_fallthru
      _
    // Predicated region
    $region14: #{_lambda_.5} parent=1 // pred_check
      _
    $region15: #{_lambda_.5} parent=1 // pred_check_branch
      %23 = sbr.rel (0) target = $region17
    $region16: #{_lambda_.5} parent=1 // pred_region
      _
    $region17: #{_lambda_.5} parent=1 // pred_fallthru
      _
    // Predicated region
    $region18: #{_lambda_.5} parent=1 // pred_check
      _
    $region19: #{_lambda_.5} parent=1 // pred_check_branch
      %25 = sbr.rel (0) target = $region21
    $region20: #{_lambda_.5} parent=1 // pred_region
      _
    $region21: #{_lambda_.5} parent=1 // pred_fallthru
      _
    // Predicated region
    $region22: #{_lambda_.5} parent=1 // pred_check
      _
    $region23: #{_lambda_.5} parent=1 // pred_check_branch
      %27 = sbr.rel (0) target = $region25
    $region24: #{_lambda_.5} parent=1 // pred_region
      _
    $region25: #{_lambda_.5} parent=1 // pred_fallthru
      _
    // Predicated region
    $region26: #{_lambda_.5} parent=1 // pred_check
      _
    $region27: #{_lambda_.5} parent=1 // pred_check_branch
      %29 = sbr.rel (0) target = $region29
    $region28: #{_lambda_.5} parent=1 // pred_region
      _
    $region29: #{_lambda_.5} parent=1 // pred_fallthru
      _
    // Predicated region
    $region30: #{_lambda_.5} parent=1 // pred_check
      _
    $region31: #{_lambda_.5} parent=1 // pred_check_branch
      %31 = sbr.rel (0) target = $region33
    $region32: #{_lambda_.5} parent=1 // pred_region
      _
    $region33: #{_lambda_.5} parent=1 // pred_fallthru
      _
    %v32 = vld [vmem:[%s0] sm:$0xff]
    %v33 = vld [vmem:[%s1] sm:$0xff]
    %v34 = vld [vmem:[%s1 + $0x8] sm:$0xff]
    %v35 = vld [vmem:[%s1 + $0x10] sm:$0xff]
    %v36 = vld [vmem:[%s1 + $0x18] sm:$0xff]
    %v37 = vld [vmem:[%s1 + $0x20] sm:$0xff]
    %v38 = vld [vmem:[%s1 + $0x28] sm:$0xff]
    %v39 = vld [vmem:[%s1 + $0x30] sm:$0xff]
    %v40 = vld [vmem:[%s1 + $0x38] sm:$0xff]
    %v41 = vld [vmem:[%s1 + $0x40] sm:$0xff]
    %v42 = vld [vmem:[%s1 + $0x48] sm:$0xff]
    %v43 = vld [vmem:[%s1 + $0x50] sm:$0xff]
    %v44 = vld [vmem:[%s1 + $0x58] sm:$0xff]
    %v45 = vld [vmem:[%s1 + $0x60] sm:$0xff]
    %v46 = vld [vmem:[%s1 + $0x68] sm:$0xff]
    %v47 = vld [vmem:[%s1 + $0x70] sm:$0xff]
    %v48 = vld [vmem:[%s1 + $0x78] sm:$0xff]
    %v49 = vld [vmem:[%s1 + $0x80] sm:$0xff]
    %v50 = vld [vmem:[%s1 + $0x88] sm:$0xff]
    %v51 = vld [vmem:[%s1 + $0x90] sm:$0xff]
    %v52 = vld [vmem:[%s1 + $0x98] sm:$0xff]
    %v53 = vld [vmem:[%s1 + $0xa0] sm:$0xff]
    %v54 = vld [vmem:[%s1 + $0xa8] sm:$0xff]
    %v55 = vld [vmem:[%s1 + $0xb0] sm:$0xff]
    %v56 = vld [vmem:[%s1 + $0xb8] sm:$0xff]
    %v57 = vld [vmem:[%s1 + $0xc0] sm:$0xff]
    %v58 = vld [vmem:[%s1 + $0xc8] sm:$0xff]
    %v59 = vld [vmem:[%s1 + $0xd0] sm:$0xff]
    %v60 = vld [vmem:[%s1 + $0xd8] sm:$0xff]
    %v61 = vld [vmem:[%s1 + $0xe0] sm:$0xff]
    %v62 = vld [vmem:[%s1 + $0xe8] sm:$0xff]
    %v63 = vld [vmem:[%s1 + $0xf0] sm:$0xff]
    %v64 = vld [vmem:[%s1 + $0xf8] sm:$0xff]
    %v65 = vld [vmem:[%s2] sm:$0x1]
    %v67 = vlaneseq
    %v68 = vshrl.u32 %v67, 7
    %v69 = vsub.s32 0, %v68
    %v70 = vrot.slane %v65, %v69
    %v73 = vcombine.high %v32, %v32
    %75 = vmatprep.subr.mxu0 0.0
    %76 = vmatpush1.msra.mxu0 %v48
    %77 = vmatprep.subr.mxu0 0.0
    %78 = vmatpush1.msra.mxu0 %v47
    %79 = vmatprep.subr.mxu0 0.0
    %80 = vmatpush1.msra.mxu0 %v46
    %81 = vmatprep.subr.mxu0 0.0
    %82 = vmatpush1.msra.mxu0 %v45
    %83 = vmatprep.subr.mxu0 0.0
    %84 = vmatpush1.msra.mxu0 %v44
    %85 = vmatprep.subr.mxu0 0.0
    %86 = vmatpush1.msra.mxu0 %v43
    %87 = vmatprep.subr.mxu0 0.0
    %88 = vmatpush1.msra.mxu0 %v42
    %89 = vmatprep.subr.mxu0 0.0
    %90 = vmatpush1.msra.mxu0 %v41
    %91 = vmatprep.subr.mxu0 0.0
    %92 = vmatpush1.msra.mxu0 %v40
    %93 = vmatprep.subr.mxu0 0.0
    %94 = vmatpush1.msra.mxu0 %v39
    %95 = vmatprep.subr.mxu0 0.0
    %96 = vmatpush1.msra.mxu0 %v38
    %97 = vmatprep.subr.mxu0 0.0
    %98 = vmatpush1.msra.mxu0 %v37
    %99 = vmatprep.subr.mxu0 0.0
    %100 = vmatpush1.msra.mxu0 %v36
    %101 = vmatprep.subr.mxu0 0.0
    %102 = vmatpush1.msra.mxu0 %v35
    %103 = vmatprep.subr.mxu0 0.0
    %104 = vmatpush1.msra.mxu0 %v34
    %105 = vmatprep.subr.mxu0 0.0
    %106 = vmatpush1.msra.mxu0 %v33
    %107 = vmatprep.subr.mxu0 0.0
    %108 = vmatpush2.msra.mxu0 %v64
    %109 = vmatprep.subr.mxu0 0.0
    %110 = vmatpush2.msra.mxu0 %v63
    %111 = vmatprep.subr.mxu0 0.0
    %112 = vmatpush2.msra.mxu0 %v62
    %113 = vmatprep.subr.mxu0 0.0
    %114 = vmatpush2.msra.mxu0 %v61
    %115 = vmatprep.subr.mxu0 0.0
    %116 = vmatpush2.msra.mxu0 %v60
    %117 = vmatprep.subr.mxu0 0.0
    %118 = vmatpush2.msra.mxu0 %v59
    %119 = vmatprep.subr.mxu0 0.0
    %120 = vmatpush2.msra.mxu0 %v58
    %121 = vmatprep.subr.mxu0 0.0
    %122 = vmatpush2.msra.mxu0 %v57
    %123 = vmatprep.subr.mxu0 0.0
    %124 = vmatpush2.msra.mxu0 %v56
    %125 = vmatprep.subr.mxu0 0.0
    %126 = vmatpush2.msra.mxu0 %v55
    %127 = vmatprep.subr.mxu0 0.0
    %128 = vmatpush2.msra.mxu0 %v54
    %129 = vmatprep.subr.mxu0 0.0
    %130 = vmatpush2.msra.mxu0 %v53
    %131 = vmatprep.subr.mxu0 0.0
    %132 = vmatpush2.msra.mxu0 %v52
    %133 = vmatprep.subr.mxu0 0.0
    %134 = vmatpush2.msra.mxu0 %v51
    %135 = vmatprep.subr.mxu0 0.0
    %136 = vmatpush2.msra.mxu0 %v50
    %137 = vmatprep.subr.mxu0 0.0
    %138 = vmatpush2.msra.mxu0 %v49
    %139 = vmatprep.mubr.f32.mxu0 %v73
    %140 = vmatmul.mubr.f32.gmra.mxu0 %v32
    %v141 = vpop.f32.mrf.mxu0
    %v142 = vadd.f32 %v70, %v141
    %v143 = vpop.f32.mrf.mxu0
    %144 = vdwg.mxu0
    %v145 = vmax.f32 %v142, 0.0
    %v146 = vld [vmem:[%s3] sm:$0xff]
    %v147 = vld [vmem:[%s3 + $0x8] sm:$0xff]
    %v148 = vld [vmem:[%s3 + $0x10] sm:$0xff]
    %v149 = vld [vmem:[%s3 + $0x18] sm:$0xff]
    %v150 = vld [vmem:[%s3 + $0x20] sm:$0xff]
    %v151 = vld [vmem:[%s3 + $0x28] sm:$0xff]
    %v152 = vld [vmem:[%s3 + $0x30] sm:$0xff]
    %v153 = vld [vmem:[%s3 + $0x38] sm:$0xff]
    %v154 = vld [vmem:[%s4] sm:$0x1]
    %v156 = vlaneseq
    %v157 = vshrl.u32 %v156, 7
    %v158 = vsub.s32 0, %v157
    %v159 = vrot.slane %v154, %v158
    %vm161 = vcmask 523264
    %v163 = vsel %vm161, %v145, 0
    %165 = vmatprep.subr.mxu0 0.0
    %166 = vmatpush1.msra.mxu0 0.0
    %167 = vmatprep.subr.mxu0 0.0
    %168 = vmatpush1.msra.mxu0 0.0
    %169 = vmatprep.subr.mxu0 0.0
    %170 = vmatpush1.msra.mxu0 0.0
    %171 = vmatprep.subr.mxu0 0.0
    %172 = vmatpush1.msra.mxu0 0.0
    %173 = vmatprep.subr.mxu0 0.0
    %174 = vmatpush1.msra.mxu0 0.0
    %175 = vmatprep.subr.mxu0 0.0
    %176 = vmatpush1.msra.mxu0 0.0
    %177 = vmatprep.subr.mxu0 0.0
    %178 = vmatpush1.msra.mxu0 0.0
    %179 = vmatprep.subr.mxu0 0.0
    %180 = vmatpush1.msra.mxu0 0.0
    %181 = vmatprep.subr.mxu0 0.0
    %182 = vmatpush1.msra.mxu0 %v153
    %183 = vmatprep.subr.mxu0 0.0
    %184 = vmatpush1.msra.mxu0 %v152
    %185 = vmatprep.subr.mxu0 0.0
    %186 = vmatpush1.msra.mxu0 %v151
    %187 = vmatprep.subr.mxu0 0.0
    %188 = vmatpush1.msra.mxu0 %v150
    %189 = vmatprep.subr.mxu0 0.0
    %190 = vmatpush1.msra.mxu0 %v149
    %191 = vmatprep.subr.mxu0 0.0
    %192 = vmatpush1.msra.mxu0 %v148
    %193 = vmatprep.subr.mxu0 0.0
    %194 = vmatpush1.msra.mxu0 %v147
    %195 = vmatprep.subr.mxu0 0.0
    %196 = vmatpush1.msra.mxu0 %v146
    %197 = vmatprep.subr.mxu0 0.0
    %198 = vmatpush2.msra.mxu0 0.0
    %199 = vmatprep.subr.mxu0 0.0
    %200 = vmatpush2.msra.mxu0 0.0
    %201 = vmatprep.subr.mxu0 0.0
    %202 = vmatpush2.msra.mxu0 0.0
    %203 = vmatprep.subr.mxu0 0.0
    %204 = vmatpush2.msra.mxu0 0.0
    %205 = vmatprep.subr.mxu0 0.0
    %206 = vmatpush2.msra.mxu0 0.0
    %207 = vmatprep.subr.mxu0 0.0
    %208 = vmatpush2.msra.mxu0 0.0
    %209 = vmatprep.subr.mxu0 0.0
    %210 = vmatpush2.msra.mxu0 0.0
    %211 = vmatprep.subr.mxu0 0.0
    %212 = vmatpush2.msra.mxu0 0.0
    %213 = vmatprep.subr.mxu0 0.0
    %214 = vmatpush2.msra.mxu0 0.0
    %215 = vmatprep.subr.mxu0 0.0
    %216 = vmatpush2.msra.mxu0 0.0
    %217 = vmatprep.subr.mxu0 0.0
    %218 = vmatpush2.msra.mxu0 0.0
    %219 = vmatprep.subr.mxu0 0.0
    %220 = vmatpush2.msra.mxu0 0.0
    %221 = vmatprep.subr.mxu0 0.0
    %222 = vmatpush2.msra.mxu0 0.0
    %223 = vmatprep.subr.mxu0 0.0
    %224 = vmatpush2.msra.mxu0 0.0
    %225 = vmatprep.subr.mxu0 0.0
    %226 = vmatpush2.msra.mxu0 0.0
    %227 = vmatprep.subr.mxu0 0.0
    %228 = vmatpush2.msra.mxu0 0.0
    %229 = vmatprep.mubr.f32.mxu0 0.0
    %230 = vmatmul.mubr.f32.gmra.mxu0 %v163
    %v231 = vpop.f32.mrf.mxu0
    %v232 = vadd.f32 %v159, %v231
    %v233 = vpop.f32.mrf.mxu0
    %234 = vdwg.mxu0
    %vm235 = vcmask 76800
    %v236 = vsel %vm235, %v232, -inf
    %237 = vmax.xlane.f32.xlu0 %v236
    %v238 = vpop.xlane.xlu0 %237
    %v239 = vsub.f32 %v232, %v238
    %v240 = vmul.f32 %v239, 1.442695
    %v241 = vpow.pop %v240
    %v242 = vsel %vm235, %v241, 0.0
    %243 = vadd.xlane.f32.xlu0 %v242
    %v244 = vpop.xlane.xlu0 %243
    %v245 = vrcp.pop %v244
    %v246 = vmul.f32 %v241, %v245
    %247 = vst.msk [vmem:[%s8] sm:$0xf] %vm235, %v246
    %v248 = vld [vmem:[%s5] sm:$0xff]
    %v249 = vld [vmem:[%s5 + $0x8] sm:$0x3]
    %v250 = vld [vmem:[%s6] sm:$0xff]
    %v251 = vld [vmem:[%s6 + $0x8] sm:$0x3]
    %v253 = vrot.slane %v246, 2
    %vm254 = vcmask 80896
    %v255 = vsel %vm254, %v253, 0
    %vm257 = vcmask 1041408
    %v259 = vsel %vm257, %v251, 0
    %261 = vmatprep.subr.mxu0 0.0
    %262 = vmatpush1.msra.mxu0 0.0
    %263 = vmatprep.subr.mxu0 0.0
    %264 = vmatpush1.msra.mxu0 0.0
    %265 = vmatprep.subr.mxu0 0.0
    %266 = vmatpush1.msra.mxu0 0.0
    %267 = vmatprep.subr.mxu0 0.0
    %268 = vmatpush1.msra.mxu0 0.0
    %269 = vmatprep.subr.mxu0 0.0
    %270 = vmatpush1.msra.mxu0 0.0
    %271 = vmatprep.subr.mxu0 0.0
    %272 = vmatpush1.msra.mxu0 0.0
    %273 = vmatprep.subr.mxu0 0.0
    %274 = vmatpush1.msra.mxu0 0.0
    %275 = vmatprep.subr.mxu0 0.0
    %276 = vmatpush1.msra.mxu0 0.0
    %277 = vmatprep.subr.mxu0 0.0
    %278 = vmatpush1.msra.mxu0 0.0
    %279 = vmatprep.subr.mxu0 0.0
    %280 = vmatpush1.msra.mxu0 0.0
    %281 = vmatprep.subr.mxu0 0.0
    %282 = vmatpush1.msra.mxu0 0.0
    %283 = vmatprep.subr.mxu0 0.0
    %284 = vmatpush1.msra.mxu0 0.0
    %285 = vmatprep.subr.mxu0 0.0
    %286 = vmatpush1.msra.mxu0 0.0
    %287 = vmatprep.subr.mxu0 0.0
    %288 = vmatpush1.msra.mxu0 0.0
    %289 = vmatprep.subr.mxu0 0.0
    %290 = vmatpush1.msra.mxu0 %v259
    %291 = vmatprep.subr.mxu0 0.0
    %292 = vmatpush1.msra.mxu0 %v250
    %293 = vmatprep.subr.mxu0 0.0
    %294 = vmatpush2.msra.mxu0 0.0
    %295 = vmatprep.subr.mxu0 0.0
    %296 = vmatpush2.msra.mxu0 0.0
    %297 = vmatprep.subr.mxu0 0.0
    %298 = vmatpush2.msra.mxu0 0.0
    %299 = vmatprep.subr.mxu0 0.0
    %300 = vmatpush2.msra.mxu0 0.0
    %301 = vmatprep.subr.mxu0 0.0
    %302 = vmatpush2.msra.mxu0 0.0
    %303 = vmatprep.subr.mxu0 0.0
    %304 = vmatpush2.msra.mxu0 0.0
    %305 = vmatprep.subr.mxu0 0.0
    %306 = vmatpush2.msra.mxu0 0.0
    %307 = vmatprep.subr.mxu0 0.0
    %308 = vmatpush2.msra.mxu0 0.0
    %309 = vmatprep.subr.mxu0 0.0
    %310 = vmatpush2.msra.mxu0 0.0
    %311 = vmatprep.subr.mxu0 0.0
    %312 = vmatpush2.msra.mxu0 0.0
    %313 = vmatprep.subr.mxu0 0.0
    %314 = vmatpush2.msra.mxu0 0.0
    %315 = vmatprep.subr.mxu0 0.0
    %316 = vmatpush2.msra.mxu0 0.0
    %317 = vmatprep.subr.mxu0 0.0
    %318 = vmatpush2.msra.mxu0 0.0
    %319 = vmatprep.subr.mxu0 0.0
    %320 = vmatpush2.msra.mxu0 0.0
    %321 = vmatprep.subr.mxu0 0.0
    %322 = vmatpush2.msra.mxu0 0.0
    %323 = vmatprep.subr.mxu0 0.0
    %324 = vmatpush2.msra.mxu0 0.0
    %325 = vmatprep.mubr.f32.mxu0 0.0
    %326 = vmatmul.mubr.f32.gmra.mxu0 %v255
    %v327 = vpop.f32.mrf.mxu0
    %v328 = vadd.f32 0.0, %v327
    %v329 = vpop.f32.mrf.mxu0
    %330 = vdwg.mxu0
    %v331 = vsel %vm254, %v246, 0
    %v334 = vsel %vm257, %v249, 0
    %336 = vmatprep.subr.mxu0 0.0
    %337 = vmatpush1.msra.mxu0 0.0
    %338 = vmatprep.subr.mxu0 0.0
    %339 = vmatpush1.msra.mxu0 0.0
    %340 = vmatprep.subr.mxu0 0.0
    %341 = vmatpush1.msra.mxu0 0.0
    %342 = vmatprep.subr.mxu0 0.0
    %343 = vmatpush1.msra.mxu0 0.0
    %344 = vmatprep.subr.mxu0 0.0
    %345 = vmatpush1.msra.mxu0 0.0
    %346 = vmatprep.subr.mxu0 0.0
    %347 = vmatpush1.msra.mxu0 0.0
    %348 = vmatprep.subr.mxu0 0.0
    %349 = vmatpush1.msra.mxu0 0.0
    %350 = vmatprep.subr.mxu0 0.0
    %351 = vmatpush1.msra.mxu0 0.0
    %352 = vmatprep.subr.mxu0 0.0
    %353 = vmatpush1.msra.mxu0 0.0
    %354 = vmatprep.subr.mxu0 0.0
    %355 = vmatpush1.msra.mxu0 0.0
    %356 = vmatprep.subr.mxu0 0.0
    %357 = vmatpush1.msra.mxu0 0.0
    %358 = vmatprep.subr.mxu0 0.0
    %359 = vmatpush1.msra.mxu0 0.0
    %360 = vmatprep.subr.mxu0 0.0
    %361 = vmatpush1.msra.mxu0 0.0
    %362 = vmatprep.subr.mxu0 0.0
    %363 = vmatpush1.msra.mxu0 0.0
    %364 = vmatprep.subr.mxu0 0.0
    %365 = vmatpush1.msra.mxu0 %v334
    %366 = vmatprep.subr.mxu0 0.0
    %367 = vmatpush1.msra.mxu0 %v248
    %368 = vmatprep.subr.mxu0 0.0
    %369 = vmatpush2.msra.mxu0 0.0
    %370 = vmatprep.subr.mxu0 0.0
    %371 = vmatpush2.msra.mxu0 0.0
    %372 = vmatprep.subr.mxu0 0.0
    %373 = vmatpush2.msra.mxu0 0.0
    %374 = vmatprep.subr.mxu0 0.0
    %375 = vmatpush2.msra.mxu0 0.0
    %376 = vmatprep.subr.mxu0 0.0
    %377 = vmatpush2.msra.mxu0 0.0
    %378 = vmatprep.subr.mxu0 0.0
    %379 = vmatpush2.msra.mxu0 0.0
    %380 = vmatprep.subr.mxu0 0.0
    %381 = vmatpush2.msra.mxu0 0.0
    %382 = vmatprep.subr.mxu0 0.0
    %383 = vmatpush2.msra.mxu0 0.0
    %384 = vmatprep.subr.mxu0 0.0
    %385 = vmatpush2.msra.mxu0 0.0
    %386 = vmatprep.subr.mxu0 0.0
    %387 = vmatpush2.msra.mxu0 0.0
    %388 = vmatprep.subr.mxu0 0.0
    %389 = vmatpush2.msra.mxu0 0.0
    %390 = vmatprep.subr.mxu0 0.0
    %391 = vmatpush2.msra.mxu0 0.0
    %392 = vmatprep.subr.mxu0 0.0
    %393 = vmatpush2.msra.mxu0 0.0
    %394 = vmatprep.subr.mxu0 0.0
    %395 = vmatpush2.msra.mxu0 0.0
    %396 = vmatprep.subr.mxu0 0.0
    %397 = vmatpush2.msra.mxu0 0.0
    %398 = vmatprep.subr.mxu0 0.0
    %399 = vmatpush2.msra.mxu0 0.0
    %400 = vmatprep.mubr.f32.mxu0 0.0
    %401 = vmatmul.mubr.f32.gmra.mxu0 %v331
    %v402 = vpop.f32.mrf.mxu0
    %v403 = vadd.f32 %v328, %v402
    %v404 = vpop.f32.mrf.mxu0
    %405 = vdwg.mxu0
    %v406 = vld [vmem:[%s7] sm:$0x1]
    %v408 = vlaneseq
    %v409 = vshrl.u32 %v408, 7
    %v410 = vsub.s32 0, %v409
    %v411 = vrot.slane %v406, %v410
    %v413 = vadd.f32 %v403, %v411
    %v414 = vsub.f32 0.0, %v413
    %v415 = vmul.f32 %v414, 1.442695
    %v416 = vpow.pop %v415
    %v417 = vadd.f32 %v416, 1.0
    %v418 = vrcp.pop %v417
    %vm419 = vcmask 9216
    %420 = vst.msk [vmem:[#allocation2] sm:$0x3] %vm419, %v418
    // Predicated region
    $region34: #{_lambda_.5} parent=1 // pred_check
      _
    $region35: #{_lambda_.5} parent=1 // pred_check_branch
      %422 = sbr.rel (0) target = $region37
    $region36: #{_lambda_.5} parent=1 // pred_region
      _
    $region37: #{_lambda_.5} parent=1 // pred_fallthru
      _
    // Predicated region
    $region38: #{_lambda_.5} parent=1 // pred_check
      _
    $region39: #{_lambda_.5} parent=1 // pred_check_branch
      %424 = sbr.rel (0) target = $region41
    $region40: #{_lambda_.5} parent=1 // pred_region
      %s426 = ssub.s32 32, 32
      %427 = vsyncadd [#allocation3], %s426
      %s429 = sshll.u32 [#allocation2], 4
      %s430 = int_to_ptr.vmem [resolvable:$true] %s429
      %432 = dma.vmem_to_hbm [thread:$0]  %s430, 32, %s9, [#allocation3]
    $region41: #{_lambda_.5} parent=1 // pred_fallthru
      _
    // Predicated region
    $region42: #{_lambda_.5} parent=1 // pred_check
      _
    $region43: #{_lambda_.5} parent=1 // pred_check_branch
      %434 = sbr.rel (0) target = $region45
    $region44: #{_lambda_.5} parent=1 // pred_region
      _
    $region45: #{_lambda_.5} parent=1 // pred_fallthru
      _
    // Predicated region
    $region46: #{_lambda_.5} parent=1 // pred_check
      _
    $region47: #{_lambda_.5} parent=1 // pred_check_branch
      %436 = sbr.rel (0) target = $region49
    $region48: #{_lambda_.5} parent=1 // pred_region
      %437 = dma.done [#allocation3], 32
    $region49: #{_lambda_.5} parent=1 // pred_fallthru
      _
    %438 = vsyncpa [#allocation3], 1

</llo_original>
